<compile_context>
chip_gen: v7x
topology: tpu7x:2x2x1
jax: 0.10.0
libtpu: 0.0.40
codegen_flags: <defaults>
</compile_context>

<pallas_src>
import functools

import jax
import jax.numpy as jnp
from jax.experimental import pallas as pl
from jax.experimental.pallas import tpu as pltpu

# Network sizes (fixed by the PyTorch module).
D_IN, D_H1, D_H2, D_OUT = 784, 512, 256, 1
D_OUT_PAD = 128                     # fc3 padded to a full lane group for the MXU


def _pick_bm(batch: int) -> int:
    """Batch-tile size. Block dims must be multiples of 8 or equal the array dim."""
    if batch <= 128:
        return batch                # single tile; block dims == array dims (always legal)
    if batch < 512:
        return 128                  # >=2 tiles -> both v7x TensorCores get work
    return 256                      # fills the 256-row MXU on v6e/v7x, still >=2 tiles


def _disc_kernel(x_ref, w1_ref, b1_ref, w2_ref, b2_ref, w3_ref, b3_ref, o_ref,
                 *, row_out: bool):
    """Fused 3-layer MLP forward for one (BM, 784) batch tile.

    Matmuls run in bf16 on the MXU with f32 accumulation; bias add, LeakyReLU
    and sigmoid stay in f32 (works on v5e which has no bf16 VPU/EUP).
    """
    # f32 -> bf16 cast done here (on the VMEM tile) so the wrapper never rewrites
    # activations in HBM.
    x = x_ref[...].astype(jnp.bfloat16)                                 # (BM, 784)

    # fc1 + LeakyReLU(0.2)
    h1 = jnp.dot(x, w1_ref[...], preferred_element_type=jnp.float32) + b1_ref[...]
    h1 = jnp.maximum(h1, 0.2 * h1)

    # fc2 + LeakyReLU(0.2)
    h2 = jnp.dot(h1.astype(jnp.bfloat16), w2_ref[...],
                 preferred_element_type=jnp.float32) + b2_ref[...]
    h2 = jnp.maximum(h2, 0.2 * h2)

    # fc3 (padded to 128 output lanes; only column 0 is real) + Sigmoid
    h3 = jnp.dot(h2.astype(jnp.bfloat16), w3_ref[...],
                 preferred_element_type=jnp.float32) + b3_ref[...]      # (BM, 128)

    if row_out:
        # Aligned (BM,128)->(128,BM) XLU transpose; row 0 holds the real logits.
        # Gives a (1, BM) lane-dense, unmasked store and one contiguous output DMA.
        o_ref[...] = jax.nn.sigmoid(jnp.transpose(h3)[:1, :])
    else:
        # Tiny-batch path (single tile): store the (BM, 1) logit column directly.
        o_ref[...] = jax.nn.sigmoid(h3[:, :1])


@jax.jit
def discriminator_forward(img, w1, b1, w2, b2, w3, b3):
    """img: (B, 1, 28, 28) f32 (NCHW, like PyTorch) -> (B, 1) f32 probabilities."""
    B = img.shape[0]
    x = img.reshape(B, D_IN)                      # free reshape; stays f32 in HBM

    bm = _pick_bm(B)
    n_tiles = pl.cdiv(B, bm)                      # partial last tile handled by Pallas
    row_out = (bm % 128 == 0)

    # One-time (tiny) weight prep: bf16 for the MXU, fc3 padded to 128 output lanes.
    # Zero pads are exact: padded columns only produce logits we slice off.
    w1b = w1.astype(jnp.bfloat16)                                             # (784, 512)
    w2b = w2.astype(jnp.bfloat16)                                             # (512, 256)
    w3p = jnp.pad(w3, ((0, 0), (0, D_OUT_PAD - D_OUT))).astype(jnp.bfloat16)  # (256, 128)
    b1f = b1.astype(jnp.float32)
    b2f = b2.astype(jnp.float32)
    b3p = jnp.pad(b3.astype(jnp.float32), ((0, 0), (0, D_OUT_PAD - D_OUT)))   # (1, 128)

    if row_out:
        out_shape = jax.ShapeDtypeStruct((1, n_tiles * bm), jnp.float32)
        out_spec = pl.BlockSpec((1, bm), lambda i: (0, i))
    else:
        out_shape = jax.ShapeDtypeStruct((n_tiles * bm, 1), jnp.float32)
        out_spec = pl.BlockSpec((bm, 1), lambda i: (i, 0))

    flops = 2 * B * (D_IN * D_H1 + D_H1 * D_H2 + D_H2 * D_OUT_PAD)
    weight_bytes = 2 * (D_IN * D_H1 + D_H1 * D_H2 + D_H2 * D_OUT_PAD)
    bytes_accessed = (B * D_IN * 4 + weight_bytes
                      + 4 * (D_H1 + D_H2 + D_OUT_PAD) + n_tiles * bm * 4)

    out = pl.pallas_call(
        functools.partial(_disc_kernel, row_out=row_out),
        out_shape=out_shape,
        grid_spec=pltpu.PrefetchScalarGridSpec(
            num_scalar_prefetch=0,
            grid=(n_tiles,),
            in_specs=[
                pl.BlockSpec((bm, D_IN), lambda i: (i, 0)),        # x tile (f32 in HBM)
                # Weights / biases: constant index_maps -> DMA'd once, kept resident.
                pl.BlockSpec((D_IN, D_H1), lambda i: (0, 0)),      # W1
                pl.BlockSpec((1, D_H1), lambda i: (0, 0)),         # b1
                pl.BlockSpec((D_H1, D_H2), lambda i: (0, 0)),      # W2
                pl.BlockSpec((1, D_H2), lambda i: (0, 0)),         # b2
                pl.BlockSpec((D_H2, D_OUT_PAD), lambda i: (0, 0)), # W3 (padded)
                pl.BlockSpec((1, D_OUT_PAD), lambda i: (0, 0)),    # b3 (padded)
            ],
            out_specs=out_spec,
        ),
        compiler_params=pltpu.CompilerParams(
            dimension_semantics=("parallel",)),
        cost_estimate=pl.CostEstimate(flops=flops, transcendentals=B,
                                      bytes_accessed=bytes_accessed),
    )(x, w1b, b1f, w2b, b2f, w3p, b3p)

    # Drop padded tail rows (partial last tile) and return (B, 1).
    return out.reshape(-1)[:B].reshape(B, D_OUT)


def init_params(key):
    """Deterministic init mimicking torch.nn.Linear default
    (U[-1/sqrt(fan_in), 1/sqrt(fan_in)]).  Weights stored as (in, out)."""
    ks = jax.random.split(key, 6)

    def lin(kw, kb, fan_in, fan_out):
        bound = 1.0 / jnp.sqrt(fan_in)
        w = jax.random.uniform(kw, (fan_in, fan_out), jnp.float32, -bound, bound)
        b = jax.random.uniform(kb, (1, fan_out), jnp.float32, -bound, bound)
        return w, b

    w1, b1 = lin(ks[0], ks[1], D_IN, D_H1)
    w2, b2 = lin(ks[2], ks[3], D_H1, D_H2)
    w3, b3 = lin(ks[4], ks[5], D_H2, D_OUT)
    return w1, b1, w2, b2, w3, b3


def _reference(img, w1, b1, w2, b2, w3, b3):
    """Pure-JAX f32 reference of the PyTorch forward."""
    x = img.reshape(img.shape[0], -1).astype(jnp.float32)
    h = x @ w1 + b1
    h = jnp.where(h > 0, h, 0.2 * h)
    h = h @ w2 + b2
    h = jnp.where(h > 0, h, 0.2 * h)
    h = h @ w3 + b3
    return jax.nn.sigmoid(h)


if __name__ == "__main__":
    key = jax.random.PRNGKey(0)
    k_img, k_par = jax.random.split(key)

    # Small batch of MNIST-shaped images (NCHW, as PyTorch expects).
    img = jax.random.normal(k_img, (2, 1, 28, 28), dtype=jnp.float32)
    params = init_params(k_par)

    out = jax.block_until_ready(discriminator_forward(img, *params))
    ref = _reference(img, *params)

    assert out.shape == (2, 1), out.shape
    # bf16 matmuls with f32 accumulation: compare to the f32 reference with a
    # bf16-appropriate tolerance.
    assert jnp.allclose(out, ref, atol=2e-2, rtol=2e-2), (out, ref)
    assert bool(jnp.all((out >= 0.0) & (out <= 1.0)))

    print("KERNEL_OK")
</pallas_src>

<mosaic_0001>
module attributes {stable_mosaic.version = 11 : i64} {
  func.func @_disc_kernel(%arg0: i32, %arg1: memref<2x784xf32, #tpu.memory_space<vmem>>, %arg2: memref<784x512xbf16, #tpu.memory_space<vmem>>, %arg3: memref<1x512xf32, #tpu.memory_space<vmem>>, %arg4: memref<512x256xbf16, #tpu.memory_space<vmem>>, %arg5: memref<1x256xf32, #tpu.memory_space<vmem>>, %arg6: memref<256x128xbf16, #tpu.memory_space<vmem>>, %arg7: memref<1x128xf32, #tpu.memory_space<vmem>>, %arg8: memref<2x1xf32, #tpu.memory_space<vmem>>) attributes {dimension_semantics = [#tpu.dimension_semantics<parallel>], iteration_bounds = array<i64: 1>, scalar_prefetch = 0 : i64, scratch_operands = 0 : i64, tpu.core_type = #tpu.core_type<tc>, window_params = [{transform_indices = @transform_0, window_bounds = array<i64: 2, 784>}, {pipeline_mode = #tpu.pipeline_mode<synchronous>, transform_indices = @transform_1, window_bounds = array<i64: 784, 512>}, {pipeline_mode = #tpu.pipeline_mode<synchronous>, transform_indices = @transform_2, window_bounds = array<i64: 1, 512>}, {pipeline_mode = #tpu.pipeline_mode<synchronous>, transform_indices = @transform_3, window_bounds = array<i64: 512, 256>}, {pipeline_mode = #tpu.pipeline_mode<synchronous>, transform_indices = @transform_4, window_bounds = array<i64: 1, 256>}, {pipeline_mode = #tpu.pipeline_mode<synchronous>, transform_indices = @transform_5, window_bounds = array<i64: 256, 128>}, {pipeline_mode = #tpu.pipeline_mode<synchronous>, transform_indices = @transform_6, window_bounds = array<i64: 1, 128>}, {transform_indices = @transform_7, window_bounds = array<i64: 2, 1>}]} {
    %c0 = arith.constant 0 : index
    %c0_0 = arith.constant 0 : index
    %0 = vector.load %arg1[%c0, %c0_0] : memref<2x784xf32, #tpu.memory_space<vmem>>, vector<2x784xf32>
    %1 = arith.truncf %0 : vector<2x784xf32> to vector<2x784xbf16>
    %c0_1 = arith.constant 0 : index
    %c0_2 = arith.constant 0 : index
    %2 = vector.load %arg2[%c0_1, %c0_2] : memref<784x512xbf16, #tpu.memory_space<vmem>>, vector<784x512xbf16>
    %cst = arith.constant dense<0.000000e+00> : vector<2x512xf32>
    %3 = tpu.matmul %1, %2, %cst {dimension_numbers = #tpu.dot_dimension_numbers<[1], [0], [0], [1], [0, 0, 1, 1], [], []>} : vector<2x784xbf16>, vector<784x512xbf16>, vector<2x512xf32> -> vector<2x512xf32>
    %c0_3 = arith.constant 0 : index
    %c0_4 = arith.constant 0 : index
    %4 = vector.load %arg3[%c0_3, %c0_4] : memref<1x512xf32, #tpu.memory_space<vmem>>, vector<1x512xf32>
    %5 = vector.broadcast %4 : vector<1x512xf32> to vector<2x512xf32>
    %6 = arith.addf %3, %5 : vector<2x512xf32>
    %cst_5 = arith.constant 2.000000e-01 : f32
    %7 = vector.broadcast %cst_5 : f32 to vector<2x512xf32>
    %8 = arith.mulf %7, %6 : vector<2x512xf32>
    %9 = arith.maximumf %6, %8 : vector<2x512xf32>
    %10 = arith.truncf %9 : vector<2x512xf32> to vector<2x512xbf16>
    %c0_6 = arith.constant 0 : index
    %c0_7 = arith.constant 0 : index
    %11 = vector.load %arg4[%c0_6, %c0_7] : memref<512x256xbf16, #tpu.memory_space<vmem>>, vector<512x256xbf16>
    %cst_8 = arith.constant dense<0.000000e+00> : vector<2x256xf32>
    %12 = tpu.matmul %10, %11, %cst_8 {dimension_numbers = #tpu.dot_dimension_numbers<[1], [0], [0], [1], [0, 0, 1, 1], [], []>} : vector<2x512xbf16>, vector<512x256xbf16>, vector<2x256xf32> -> vector<2x256xf32>
    %c0_9 = arith.constant 0 : index
    %c0_10 = arith.constant 0 : index
    %13 = vector.load %arg5[%c0_9, %c0_10] : memref<1x256xf32, #tpu.memory_space<vmem>>, vector<1x256xf32>
    %14 = vector.broadcast %13 : vector<1x256xf32> to vector<2x256xf32>
    %15 = arith.addf %12, %14 : vector<2x256xf32>
    %cst_11 = arith.constant 2.000000e-01 : f32
    %16 = vector.broadcast %cst_11 : f32 to vector<2x256xf32>
    %17 = arith.mulf %16, %15 : vector<2x256xf32>
    %18 = arith.maximumf %15, %17 : vector<2x256xf32>
    %19 = arith.truncf %18 : vector<2x256xf32> to vector<2x256xbf16>
    %c0_12 = arith.constant 0 : index
    %c0_13 = arith.constant 0 : index
    %20 = vector.load %arg6[%c0_12, %c0_13] : memref<256x128xbf16, #tpu.memory_space<vmem>>, vector<256x128xbf16>
    %cst_14 = arith.constant dense<0.000000e+00> : vector<2x128xf32>
    %21 = tpu.matmul %19, %20, %cst_14 {dimension_numbers = #tpu.dot_dimension_numbers<[1], [0], [0], [1], [0, 0, 1, 1], [], []>} : vector<2x256xbf16>, vector<256x128xbf16>, vector<2x128xf32> -> vector<2x128xf32>
    %c0_15 = arith.constant 0 : index
    %c0_16 = arith.constant 0 : index
    %22 = vector.load %arg7[%c0_15, %c0_16] : memref<1x128xf32, #tpu.memory_space<vmem>>, vector<1x128xf32>
    %23 = vector.broadcast %22 : vector<1x128xf32> to vector<2x128xf32>
    %24 = arith.addf %21, %23 : vector<2x128xf32>
    %25 = vector.extract_strided_slice %24 {offsets = [0, 0], sizes = [2, 1], strides = [1, 1]} : vector<2x128xf32> to vector<2x1xf32>
    %26 = arith.negf %25 : vector<2x1xf32>
    %27 = math.exp %26 : vector<2x1xf32>
    %cst_17 = arith.constant 1.000000e+00 : f32
    %28 = vector.broadcast %cst_17 : f32 to vector<2x1xf32>
    %29 = arith.addf %28, %27 : vector<2x1xf32>
    %30 = arith.divf %28, %29 : vector<2x1xf32>
    %c0_18 = arith.constant 0 : index
    %c0_19 = arith.constant 0 : index
    %31 = vector.load %arg8[%c0_18, %c0_19] : memref<2x1xf32, #tpu.memory_space<vmem>>, vector<2x1xf32>
    tpu.vector_store %arg8[%c0_18, %c0_19], %30 {strides = array<i32>} : memref<2x1xf32, #tpu.memory_space<vmem>>, vector<2x1xf32>,
    return
  }
  func.func @transform_0(%arg0: i32) -> (i32, i32) {
    %c0_i32 = arith.constant 0 : i32
    %c0_i32_0 = arith.constant 0 : i32
    return %arg0, %c0_i32 : i32, i32
  }
  func.func @transform_1(%arg0: i32) -> (i32, i32) {
    %c0_i32 = arith.constant 0 : i32
    %c0_i32_0 = arith.constant 0 : i32
    %c0_i32_1 = arith.constant 0 : i32
    return %c0_i32, %c0_i32_0 : i32, i32
  }
  func.func @transform_2(%arg0: i32) -> (i32, i32) {
    %c0_i32 = arith.constant 0 : i32
    %c0_i32_0 = arith.constant 0 : i32
    %c0_i32_1 = arith.constant 0 : i32
    return %c0_i32, %c0_i32_0 : i32, i32
  }
  func.func @transform_3(%arg0: i32) -> (i32, i32) {
    %c0_i32 = arith.constant 0 : i32
    %c0_i32_0 = arith.constant 0 : i32
    %c0_i32_1 = arith.constant 0 : i32
    return %c0_i32, %c0_i32_0 : i32, i32
  }
  func.func @transform_4(%arg0: i32) -> (i32, i32) {
    %c0_i32 = arith.constant 0 : i32
    %c0_i32_0 = arith.constant 0 : i32
    %c0_i32_1 = arith.constant 0 : i32
    return %c0_i32, %c0_i32_0 : i32, i32
  }
  func.func @transform_5(%arg0: i32) -> (i32, i32) {
    %c0_i32 = arith.constant 0 : i32
    %c0_i32_0 = arith.constant 0 : i32
    %c0_i32_1 = arith.constant 0 : i32
    return %c0_i32, %c0_i32_0 : i32, i32
  }
  func.func @transform_6(%arg0: i32) -> (i32, i32) {
    %c0_i32 = arith.constant 0 : i32
    %c0_i32_0 = arith.constant 0 : i32
    %c0_i32_1 = arith.constant 0 : i32
    return %c0_i32, %c0_i32_0 : i32, i32
  }
  func.func @transform_7(%arg0: i32) -> (i32, i32) {
    %c0_i32 = arith.constant 0 : i32
    %c0_i32_0 = arith.constant 0 : i32
    return %arg0, %c0_i32 : i32, i32
  }
}

</mosaic_0001>

<llo_original>
// kernel: discriminator_forward.1
$region0: #{discriminator_forward.1}
  #allocation0 [shape = 'u32[]', space=smem, size = 0x4, offset = 0x4, fixed_abs, tag = 'smem constant byte address 0x4 - core index']
  #allocation1 [shape = 'u32[144,128]{1,0:T(1,128)}', space=vmem, size = 0x12000, scoped, tag = 'internal scratch']
  %s0 = inlined_call_operand.vmem [shape: f32[2,784], index: 0, kind: input, shape index: {}]
  %s1 = inlined_call_operand.vmem [shape: bf16[784,512], index: 1, kind: input, shape index: {}]
  %s2 = inlined_call_operand.vmem [shape: f32[1,512], index: 2, kind: input, shape index: {}]
  %s3 = inlined_call_operand.vmem [shape: bf16[512,256], index: 3, kind: input, shape index: {}]
  %s4 = inlined_call_operand.vmem [shape: f32[1,256], index: 4, kind: input, shape index: {}]
  %s5 = inlined_call_operand.vmem [shape: bf16[256,128], index: 5, kind: input, shape index: {}]
  %s6 = inlined_call_operand.vmem [shape: f32[1,128], index: 6, kind: input, shape index: {}]
  %s7 = inlined_call_operand.vmem [shape: f32[2,1], index: 7, kind: output, shape index: {}]
  %s8 = sld [smem:[#allocation0]]
  $region38: #{discriminator_forward.1} parent=0
    _
  %s10 = ssub.s32 1, %s8
  %s11 = scalar_select 0, %s10, %s8
  // Predicated region
  $region2: #{discriminator_forward.1} parent=0 // pred_check
    _
  $region3: #{discriminator_forward.1} parent=0 // pred_check_branch
    %13 = sbr.rel (0) target = $region5
  $region4: #{discriminator_forward.1} parent=0 // pred_region
    _
  $region5: #{discriminator_forward.1} parent=0 // pred_fallthru
    _
  // Predicated region
  $region6: #{discriminator_forward.1} parent=0 // pred_check
    _
  $region7: #{discriminator_forward.1} parent=0 // pred_check_branch
    %15 = sbr.rel (0) target = $region9
  $region8: #{discriminator_forward.1} parent=0 // pred_region
    _
  $region9: #{discriminator_forward.1} parent=0 // pred_fallthru
    _
  // Predicated region
  $region10: #{discriminator_forward.1} parent=0 // pred_check
    _
  $region11: #{discriminator_forward.1} parent=0 // pred_check_branch
    %17 = sbr.rel (0) target = $region13
  $region12: #{discriminator_forward.1} parent=0 // pred_region
    _
  $region13: #{discriminator_forward.1} parent=0 // pred_fallthru
    _
  // Predicated region
  $region14: #{discriminator_forward.1} parent=0 // pred_check
    _
  $region15: #{discriminator_forward.1} parent=0 // pred_check_branch
    %19 = sbr.rel (0) target = $region17
  $region16: #{discriminator_forward.1} parent=0 // pred_region
    _
  $region17: #{discriminator_forward.1} parent=0 // pred_fallthru
    _
  // Predicated region
  $region18: #{discriminator_forward.1} parent=0 // pred_check
    _
  $region19: #{discriminator_forward.1} parent=0 // pred_check_branch
    %21 = sbr.rel (0) target = $region21
  $region20: #{discriminator_forward.1} parent=0 // pred_region
    _
  $region21: #{discriminator_forward.1} parent=0 // pred_fallthru
    _
  // Predicated region
  $region22: #{discriminator_forward.1} parent=0 // pred_check
    _
  $region23: #{discriminator_forward.1} parent=0 // pred_check_branch
    %23 = sbr.rel (0) target = $region25
  $region24: #{discriminator_forward.1} parent=0 // pred_region
    _
  $region25: #{discriminator_forward.1} parent=0 // pred_fallthru
    _
  // Predicated region
  $region26: #{discriminator_forward.1} parent=0 // pred_check
    _
  $region27: #{discriminator_forward.1} parent=0 // pred_check_branch
    %25 = sbr.rel (0) target = $region29
  $region28: #{discriminator_forward.1} parent=0 // pred_region
    _
  $region29: #{discriminator_forward.1} parent=0 // pred_fallthru
    _
  %v27 = vld [vmem:[%s0] sm:$0xff]
  %v28 = vld [vmem:[%s0 + $0x8] sm:$0x3f]
  %v31 = vcombine.high %v27, %v27
  %v33 = vunpack.c.l.s4 1983009808
  %v34 = vunpack.c.0.s8 %v33
  %v35 = vlaneseq
  %v36 = vshrl.u32 %v35, 7
  %v37 = vsub.s32 %v34, %v36
  %v38 = vrot.slane %v27, %v37
  %v40 = vunpack.c.l.s4 1983009808
  %v41 = vunpack.c.0.s8 %v40
  %v42 = vlaneseq
  %v43 = vshrl.u32 %v42, 7
  %v44 = vsub.s32 %v41, %v43
  %v45 = vrot.slane %v31, %v44
  %v46 = vcombine.high %v38, %v38
  %v47 = vcombine.high %v45, %v45
  %v48 = vcombine.high %v28, %v28
  %v50 = vunpack.c.l.s4 1983009808
  %v51 = vunpack.c.0.s8 %v50
  %v52 = vlaneseq
  %v53 = vshrl.u32 %v52, 7
  %v54 = vsub.s32 %v51, %v53
  %v55 = vrot.slane %v28, %v54
  %v57 = vunpack.c.l.s4 1983009808
  %v58 = vunpack.c.0.s8 %v57
  %v59 = vlaneseq
  %v60 = vshrl.u32 %v59, 7
  %v61 = vsub.s32 %v58, %v60
  %v62 = vrot.slane %v48, %v61
  %v63 = vcombine.high %v55, %v55
  %v71 = vpack.c.bf16 %v38, %v38
  %v72 = vpack.c.bf16 %v46, %v46
  %v73 = vpack.c.bf16 %v45, %v45
  %v74 = vpack.c.bf16 %v47, %v47
  %v75 = vpack.c.bf16 %v55, %v55
  %v76 = vpack.c.bf16 %v63, %v63
  %v77 = vpack.c.bf16 %v62, %v62
  %v78 = vld [vmem:[%s1] sm:$0xff]
  %v79 = vld [vmem:[%s1 + $0x8] sm:$0xff]
  %v80 = vld [vmem:[%s1 + $0x10] sm:$0xff]
  %v81 = vld [vmem:[%s1 + $0x18] sm:$0xff]
  %v82 = vld [vmem:[%s1 + $0x20] sm:$0xff]
  %v83 = vld [vmem:[%s1 + $0x28] sm:$0xff]
  %v84 = vld [vmem:[%s1 + $0x30] sm:$0xff]
  %v85 = vld [vmem:[%s1 + $0x38] sm:$0xff]
  %v86 = vld [vmem:[%s1 + $0x40] sm:$0xff]
  %v87 = vld [vmem:[%s1 + $0x48] sm:$0xff]
  %v88 = vld [vmem:[%s1 + $0x50] sm:$0xff]
  %v89 = vld [vmem:[%s1 + $0x58] sm:$0xff]
  %v90 = vld [vmem:[%s1 + $0x60] sm:$0xff]
  %v91 = vld [vmem:[%s1 + $0x68] sm:$0xff]
  %v92 = vld [vmem:[%s1 + $0x70] sm:$0xff]
  %v93 = vld [vmem:[%s1 + $0x78] sm:$0xff]
  %v94 = vld [vmem:[%s1 + $0x80] sm:$0xff]
  %v95 = vld [vmem:[%s1 + $0x88] sm:$0xff]
  %v96 = vld [vmem:[%s1 + $0x90] sm:$0xff]
  %v97 = vld [vmem:[%s1 + $0x98] sm:$0xff]
  %v98 = vld [vmem:[%s1 + $0xa0] sm:$0xff]
  %v99 = vld [vmem:[%s1 + $0xa8] sm:$0xff]
  %v100 = vld [vmem:[%s1 + $0xb0] sm:$0xff]
  %v101 = vld [vmem:[%s1 + $0xb8] sm:$0xff]
  %v102 = vld [vmem:[%s1 + $0xc0] sm:$0xff]
  %v103 = vld [vmem:[%s1 + $0xc8] sm:$0xff]
  %v104 = vld [vmem:[%s1 + $0xd0] sm:$0xff]
  %v105 = vld [vmem:[%s1 + $0xd8] sm:$0xff]
  %v106 = vld [vmem:[%s1 + $0xe0] sm:$0xff]
  %v107 = vld [vmem:[%s1 + $0xe8] sm:$0xff]
  %v108 = vld [vmem:[%s1 + $0xf0] sm:$0xff]
  %v109 = vld [vmem:[%s1 + $0xf8] sm:$0xff]
  %v110 = vld [vmem:[%s1 + $0x100] sm:$0xff]
  %v111 = vld [vmem:[%s1 + $0x108] sm:$0xff]
  %v112 = vld [vmem:[%s1 + $0x110] sm:$0xff]
  %v113 = vld [vmem:[%s1 + $0x118] sm:$0xff]
  %v114 = vld [vmem:[%s1 + $0x120] sm:$0xff]
  %v115 = vld [vmem:[%s1 + $0x128] sm:$0xff]
  %v116 = vld [vmem:[%s1 + $0x130] sm:$0xff]
  %v117 = vld [vmem:[%s1 + $0x138] sm:$0xff]
  %v118 = vld [vmem:[%s1 + $0x140] sm:$0xff]
  %v119 = vld [vmem:[%s1 + $0x148] sm:$0xff]
  %v120 = vld [vmem:[%s1 + $0x150] sm:$0xff]
  %v121 = vld [vmem:[%s1 + $0x158] sm:$0xff]
  %v122 = vld [vmem:[%s1 + $0x160] sm:$0xff]
  %v123 = vld [vmem:[%s1 + $0x168] sm:$0xff]
  %v124 = vld [vmem:[%s1 + $0x170] sm:$0xff]
  %v125 = vld [vmem:[%s1 + $0x178] sm:$0xff]
  %v126 = vld [vmem:[%s1 + $0x180] sm:$0xff]
  %v127 = vld [vmem:[%s1 + $0x188] sm:$0xff]
  %v128 = vld [vmem:[%s1 + $0x190] sm:$0xff]
  %v129 = vld [vmem:[%s1 + $0x198] sm:$0xff]
  %v130 = vld [vmem:[%s1 + $0x1a0] sm:$0xff]
  %v131 = vld [vmem:[%s1 + $0x1a8] sm:$0xff]
  %v132 = vld [vmem:[%s1 + $0x1b0] sm:$0xff]
  %v133 = vld [vmem:[%s1 + $0x1b8] sm:$0xff]
  %v134 = vld [vmem:[%s1 + $0x1c0] sm:$0xff]
  %v135 = vld [vmem:[%s1 + $0x1c8] sm:$0xff]
  %v136 = vld [vmem:[%s1 + $0x1d0] sm:$0xff]
  %v137 = vld [vmem:[%s1 + $0x1d8] sm:$0xff]
  %v138 = vld [vmem:[%s1 + $0x1e0] sm:$0xff]
  %v139 = vld [vmem:[%s1 + $0x1e8] sm:$0xff]
  %v140 = vld [vmem:[%s1 + $0x1f0] sm:$0xff]
  %v141 = vld [vmem:[%s1 + $0x1f8] sm:$0xff]
  %v142 = vld [vmem:[%s1 + $0x200] sm:$0xff]
  %v143 = vld [vmem:[%s1 + $0x208] sm:$0xff]
  %v144 = vld [vmem:[%s1 + $0x210] sm:$0xff]
  %v145 = vld [vmem:[%s1 + $0x218] sm:$0xff]
  %v146 = vld [vmem:[%s1 + $0x220] sm:$0xff]
  %v147 = vld [vmem:[%s1 + $0x228] sm:$0xff]
  %v148 = vld [vmem:[%s1 + $0x230] sm:$0xff]
  %v149 = vld [vmem:[%s1 + $0x238] sm:$0xff]
  %v150 = vld [vmem:[%s1 + $0x240] sm:$0xff]
  %v151 = vld [vmem:[%s1 + $0x248] sm:$0xff]
  %v152 = vld [vmem:[%s1 + $0x250] sm:$0xff]
  %v153 = vld [vmem:[%s1 + $0x258] sm:$0xff]
  %v154 = vld [vmem:[%s1 + $0x260] sm:$0xff]
  %v155 = vld [vmem:[%s1 + $0x268] sm:$0xff]
  %v156 = vld [vmem:[%s1 + $0x270] sm:$0xff]
  %v157 = vld [vmem:[%s1 + $0x278] sm:$0xff]
  %v158 = vld [vmem:[%s1 + $0x280] sm:$0xff]
  %v159 = vld [vmem:[%s1 + $0x288] sm:$0xff]
  %v160 = vld [vmem:[%s1 + $0x290] sm:$0xff]
  %v161 = vld [vmem:[%s1 + $0x298] sm:$0xff]
  %v162 = vld [vmem:[%s1 + $0x2a0] sm:$0xff]
  %v163 = vld [vmem:[%s1 + $0x2a8] sm:$0xff]
  %v164 = vld [vmem:[%s1 + $0x2b0] sm:$0xff]
  %v165 = vld [vmem:[%s1 + $0x2b8] sm:$0xff]
  %v166 = vld [vmem:[%s1 + $0x2c0] sm:$0xff]
  %v167 = vld [vmem:[%s1 + $0x2c8] sm:$0xff]
  %v168 = vld [vmem:[%s1 + $0x2d0] sm:$0xff]
  %v169 = vld [vmem:[%s1 + $0x2d8] sm:$0xff]
  %v170 = vld [vmem:[%s1 + $0x2e0] sm:$0xff]
  %v171 = vld [vmem:[%s1 + $0x2e8] sm:$0xff]
  %v172 = vld [vmem:[%s1 + $0x2f0] sm:$0xff]
  %v173 = vld [vmem:[%s1 + $0x2f8] sm:$0xff]
  %v174 = vld [vmem:[%s1 + $0x300] sm:$0xff]
  %v175 = vld [vmem:[%s1 + $0x308] sm:$0xff]
  %v176 = vld [vmem:[%s1 + $0x310] sm:$0xff]
  %v177 = vld [vmem:[%s1 + $0x318] sm:$0xff]
  %v178 = vld [vmem:[%s1 + $0x320] sm:$0xff]
  %v179 = vld [vmem:[%s1 + $0x328] sm:$0xff]
  %v180 = vld [vmem:[%s1 + $0x330] sm:$0xff]
  %v181 = vld [vmem:[%s1 + $0x338] sm:$0xff]
  %v182 = vld [vmem:[%s1 + $0x340] sm:$0xff]
  %v183 = vld [vmem:[%s1 + $0x348] sm:$0xff]
  %v184 = vld [vmem:[%s1 + $0x350] sm:$0xff]
  %v185 = vld [vmem:[%s1 + $0x358] sm:$0xff]
  %v186 = vld [vmem:[%s1 + $0x360] sm:$0xff]
  %v187 = vld [vmem:[%s1 + $0x368] sm:$0xff]
  %v188 = vld [vmem:[%s1 + $0x370] sm:$0xff]
  %v189 = vld [vmem:[%s1 + $0x378] sm:$0xff]
  %v190 = vld [vmem:[%s1 + $0x380] sm:$0xff]
  %v191 = vld [vmem:[%s1 + $0x388] sm:$0xff]
  %v192 = vld [vmem:[%s1 + $0x390] sm:$0xff]
  %v193 = vld [vmem:[%s1 + $0x398] sm:$0xff]
  %v194 = vld [vmem:[%s1 + $0x3a0] sm:$0xff]
  %v195 = vld [vmem:[%s1 + $0x3a8] sm:$0xff]
  %v196 = vld [vmem:[%s1 + $0x3b0] sm:$0xff]
  %v197 = vld [vmem:[%s1 + $0x3b8] sm:$0xff]
  %v198 = vld [vmem:[%s1 + $0x3c0] sm:$0xff]
  %v199 = vld [vmem:[%s1 + $0x3c8] sm:$0xff]
  %v200 = vld [vmem:[%s1 + $0x3d0] sm:$0xff]
  %v201 = vld [vmem:[%s1 + $0x3d8] sm:$0xff]
  %v202 = vld [vmem:[%s1 + $0x3e0] sm:$0xff]
  %v203 = vld [vmem:[%s1 + $0x3e8] sm:$0xff]
  %v204 = vld [vmem:[%s1 + $0x3f0] sm:$0xff]
  %v205 = vld [vmem:[%s1 + $0x3f8] sm:$0xff]
  %v206 = vld [vmem:[%s1 + $0x400] sm:$0xff]
  %v207 = vld [vmem:[%s1 + $0x408] sm:$0xff]
  %v208 = vld [vmem:[%s1 + $0x410] sm:$0xff]
  %v209 = vld [vmem:[%s1 + $0x418] sm:$0xff]
  %v210 = vld [vmem:[%s1 + $0x420] sm:$0xff]
  %v211 = vld [vmem:[%s1 + $0x428] sm:$0xff]
  %v212 = vld [vmem:[%s1 + $0x430] sm:$0xff]
  %v213 = vld [vmem:[%s1 + $0x438] sm:$0xff]
  %v214 = vld [vmem:[%s1 + $0x440] sm:$0xff]
  %v215 = vld [vmem:[%s1 + $0x448] sm:$0xff]
  %v216 = vld [vmem:[%s1 + $0x450] sm:$0xff]
  %v217 = vld [vmem:[%s1 + $0x458] sm:$0xff]
  %v218 = vld [vmem:[%s1 + $0x460] sm:$0xff]
  %v219 = vld [vmem:[%s1 + $0x468] sm:$0xff]
  %v220 = vld [vmem:[%s1 + $0x470] sm:$0xff]
  %v221 = vld [vmem:[%s1 + $0x478] sm:$0xff]
  %v222 = vld [vmem:[%s1 + $0x480] sm:$0xff]
  %v223 = vld [vmem:[%s1 + $0x488] sm:$0xff]
  %v224 = vld [vmem:[%s1 + $0x490] sm:$0xff]
  %v225 = vld [vmem:[%s1 + $0x498] sm:$0xff]
  %v226 = vld [vmem:[%s1 + $0x4a0] sm:$0xff]
  %v227 = vld [vmem:[%s1 + $0x4a8] sm:$0xff]
  %v228 = vld [vmem:[%s1 + $0x4b0] sm:$0xff]
  %v229 = vld [vmem:[%s1 + $0x4b8] sm:$0xff]
  %v230 = vld [vmem:[%s1 + $0x4c0] sm:$0xff]
  %v231 = vld [vmem:[%s1 + $0x4c8] sm:$0xff]
  %v232 = vld [vmem:[%s1 + $0x4d0] sm:$0xff]
  %v233 = vld [vmem:[%s1 + $0x4d8] sm:$0xff]
  %v234 = vld [vmem:[%s1 + $0x4e0] sm:$0xff]
  %v235 = vld [vmem:[%s1 + $0x4e8] sm:$0xff]
  %v236 = vld [vmem:[%s1 + $0x4f0] sm:$0xff]
  %v237 = vld [vmem:[%s1 + $0x4f8] sm:$0xff]
  %v238 = vld [vmem:[%s1 + $0x500] sm:$0xff]
  %v239 = vld [vmem:[%s1 + $0x508] sm:$0xff]
  %v240 = vld [vmem:[%s1 + $0x510] sm:$0xff]
  %v241 = vld [vmem:[%s1 + $0x518] sm:$0xff]
  %v242 = vld [vmem:[%s1 + $0x520] sm:$0xff]
  %v243 = vld [vmem:[%s1 + $0x528] sm:$0xff]
  %v244 = vld [vmem:[%s1 + $0x530] sm:$0xff]
  %v245 = vld [vmem:[%s1 + $0x538] sm:$0xff]
  %v246 = vld [vmem:[%s1 + $0x540] sm:$0xff]
  %v247 = vld [vmem:[%s1 + $0x548] sm:$0xff]
  %v248 = vld [vmem:[%s1 + $0x550] sm:$0xff]
  %v249 = vld [vmem:[%s1 + $0x558] sm:$0xff]
  %v250 = vld [vmem:[%s1 + $0x560] sm:$0xff]
  %v251 = vld [vmem:[%s1 + $0x568] sm:$0xff]
  %v252 = vld [vmem:[%s1 + $0x570] sm:$0xff]
  %v253 = vld [vmem:[%s1 + $0x578] sm:$0xff]
  %v254 = vld [vmem:[%s1 + $0x580] sm:$0xff]
  %v255 = vld [vmem:[%s1 + $0x588] sm:$0xff]
  %v256 = vld [vmem:[%s1 + $0x590] sm:$0xff]
  %v257 = vld [vmem:[%s1 + $0x598] sm:$0xff]
  %v258 = vld [vmem:[%s1 + $0x5a0] sm:$0xff]
  %v259 = vld [vmem:[%s1 + $0x5a8] sm:$0xff]
  %v260 = vld [vmem:[%s1 + $0x5b0] sm:$0xff]
  %v261 = vld [vmem:[%s1 + $0x5b8] sm:$0xff]
  %v262 = vld [vmem:[%s1 + $0x5c0] sm:$0xff]
  %v263 = vld [vmem:[%s1 + $0x5c8] sm:$0xff]
  %v264 = vld [vmem:[%s1 + $0x5d0] sm:$0xff]
  %v265 = vld [vmem:[%s1 + $0x5d8] sm:$0xff]
  %v266 = vld [vmem:[%s1 + $0x5e0] sm:$0xff]
  %v267 = vld [vmem:[%s1 + $0x5e8] sm:$0xff]
  %v268 = vld [vmem:[%s1 + $0x5f0] sm:$0xff]
  %v269 = vld [vmem:[%s1 + $0x5f8] sm:$0xff]
  %v270 = vld [vmem:[%s1 + $0x600] sm:$0xff]
  %v271 = vld [vmem:[%s1 + $0x608] sm:$0xff]
  %v272 = vld [vmem:[%s1 + $0x610] sm:$0xff]
  %v273 = vld [vmem:[%s1 + $0x618] sm:$0xff]
  %v274 = vld [vmem:[%s2] sm:$0xf]
  %v276 = vlaneseq
  %v277 = vshrl.u32 %v276, 7
  %v278 = vsub.s32 0, %v277
  %v279 = vrot.slane %v274, %v278
  %v280 = vlaneseq
  %v281 = vshrl.u32 %v280, 7
  %v282 = vsub.s32 1, %v281
  %v283 = vrot.slane %v274, %v282
  %v284 = vlaneseq
  %v285 = vshrl.u32 %v284, 7
  %v286 = vsub.s32 2, %v285
  %v287 = vrot.slane %v274, %v286
  %v288 = vlaneseq
  %v289 = vshrl.u32 %v288, 7
  %v290 = vsub.s32 3, %v289
  %v291 = vrot.slane %v274, %v290
  %v492 = vunpack.c.l.b16 %v78
  %v493 = vunpack.c.h.b16 %v78
  %v494 = vunpack.c.l.b16 %v79
  %v495 = vunpack.c.h.b16 %v79
  %v496 = vunpack.c.l.b16 %v80
  %v497 = vunpack.c.h.b16 %v80
  %v498 = vunpack.c.l.b16 %v81
  %v499 = vunpack.c.h.b16 %v81
  %v500 = vunpack.c.l.b16 %v82
  %v501 = vunpack.c.h.b16 %v82
  %v502 = vunpack.c.l.b16 %v83
  %v503 = vunpack.c.h.b16 %v83
  %v504 = vunpack.c.l.b16 %v84
  %v505 = vunpack.c.h.b16 %v84
  %v506 = vunpack.c.l.b16 %v85
  %v507 = vunpack.c.h.b16 %v85
  %v508 = vunpack.c.l.b16 %v86
  %v509 = vunpack.c.h.b16 %v86
  %v510 = vunpack.c.l.b16 %v87
  %v511 = vunpack.c.h.b16 %v87
  %v512 = vunpack.c.l.b16 %v88
  %v513 = vunpack.c.h.b16 %v88
  %v514 = vunpack.c.l.b16 %v89
  %v515 = vunpack.c.h.b16 %v89
  %v516 = vunpack.c.l.b16 %v90
  %v517 = vunpack.c.h.b16 %v90
  %v518 = vunpack.c.l.b16 %v91
  %v519 = vunpack.c.h.b16 %v91
  %v520 = vunpack.c.l.b16 %v92
  %v521 = vunpack.c.h.b16 %v92
  %v522 = vunpack.c.l.b16 %v93
  %v523 = vunpack.c.h.b16 %v93
  %v524 = vunpack.c.l.b16 %v94
  %v525 = vunpack.c.h.b16 %v94
  %v526 = vunpack.c.l.b16 %v95
  %v527 = vunpack.c.h.b16 %v95
  %v528 = vunpack.c.l.b16 %v96
  %v529 = vunpack.c.h.b16 %v96
  %v530 = vunpack.c.l.b16 %v97
  %v531 = vunpack.c.h.b16 %v97
  %v532 = vunpack.c.l.b16 %v98
  %v533 = vunpack.c.h.b16 %v98
  %v534 = vunpack.c.l.b16 %v99
  %v535 = vunpack.c.h.b16 %v99
  %v536 = vunpack.c.l.b16 %v100
  %v537 = vunpack.c.h.b16 %v100
  %v538 = vunpack.c.l.b16 %v101
  %v539 = vunpack.c.h.b16 %v101
  %v540 = vunpack.c.l.b16 %v102
  %v541 = vunpack.c.h.b16 %v102
  %v542 = vunpack.c.l.b16 %v103
  %v543 = vunpack.c.h.b16 %v103
  %v544 = vunpack.c.l.b16 %v104
  %v545 = vunpack.c.h.b16 %v104
  %v546 = vunpack.c.l.b16 %v105
  %v547 = vunpack.c.h.b16 %v105
  %v548 = vunpack.c.l.b16 %v106
  %v549 = vunpack.c.h.b16 %v106
  %v550 = vunpack.c.l.b16 %v107
  %v551 = vunpack.c.h.b16 %v107
  %v552 = vunpack.c.l.b16 %v108
  %v553 = vunpack.c.h.b16 %v108
  %v554 = vunpack.c.l.b16 %v109
  %v555 = vunpack.c.h.b16 %v109
  %v556 = vunpack.c.l.b16 %v110
  %v557 = vunpack.c.h.b16 %v110
  %v558 = vunpack.c.l.b16 %v111
  %v559 = vunpack.c.h.b16 %v111
  %v560 = vunpack.c.l.b16 %v112
  %v561 = vunpack.c.h.b16 %v112
  %v562 = vunpack.c.l.b16 %v113
  %v563 = vunpack.c.h.b16 %v113
  %v564 = vunpack.c.l.b16 %v114
  %v565 = vunpack.c.h.b16 %v114
  %v566 = vunpack.c.l.b16 %v115
  %v567 = vunpack.c.h.b16 %v115
  %v568 = vunpack.c.l.b16 %v116
  %v569 = vunpack.c.h.b16 %v116
  %v570 = vunpack.c.l.b16 %v117
  %v571 = vunpack.c.h.b16 %v117
  %v572 = vunpack.c.l.b16 %v118
  %v573 = vunpack.c.h.b16 %v118
  %v574 = vunpack.c.l.b16 %v119
  %v575 = vunpack.c.h.b16 %v119
  %v576 = vunpack.c.l.b16 %v120
  %v577 = vunpack.c.h.b16 %v120
  %v578 = vunpack.c.l.b16 %v121
  %v579 = vunpack.c.h.b16 %v121
  %v580 = vunpack.c.l.b16 %v122
  %v581 = vunpack.c.h.b16 %v122
  %v582 = vunpack.c.l.b16 %v123
  %v583 = vunpack.c.h.b16 %v123
  %v584 = vunpack.c.l.b16 %v124
  %v585 = vunpack.c.h.b16 %v124
  %v586 = vunpack.c.l.b16 %v125
  %v587 = vunpack.c.h.b16 %v125
  %v588 = vunpack.c.l.b16 %v126
  %v589 = vunpack.c.h.b16 %v126
  %v590 = vunpack.c.l.b16 %v127
  %v591 = vunpack.c.h.b16 %v127
  %v592 = vunpack.c.l.b16 %v128
  %v593 = vunpack.c.h.b16 %v128
  %v594 = vunpack.c.l.b16 %v129
  %v595 = vunpack.c.h.b16 %v129
  %v596 = vunpack.c.l.b16 %v130
  %v597 = vunpack.c.h.b16 %v130
  %v598 = vunpack.c.l.b16 %v131
  %v599 = vunpack.c.h.b16 %v131
  %v600 = vunpack.c.l.b16 %v132
  %v601 = vunpack.c.h.b16 %v132
  %v602 = vunpack.c.l.b16 %v133
  %v603 = vunpack.c.h.b16 %v133
  %v604 = vunpack.c.l.b16 %v134
  %v605 = vunpack.c.h.b16 %v134
  %v606 = vunpack.c.l.b16 %v135
  %v607 = vunpack.c.h.b16 %v135
  %v608 = vunpack.c.l.b16 %v136
  %v609 = vunpack.c.h.b16 %v136
  %v610 = vunpack.c.l.b16 %v137
  %v611 = vunpack.c.h.b16 %v137
  %v612 = vunpack.c.l.b16 %v138
  %v613 = vunpack.c.h.b16 %v138
  %v614 = vunpack.c.l.b16 %v139
  %v615 = vunpack.c.h.b16 %v139
  %v616 = vunpack.c.l.b16 %v140
  %v617 = vunpack.c.h.b16 %v140
  %v618 = vunpack.c.l.b16 %v141
  %v619 = vunpack.c.h.b16 %v141
  %v620 = vunpack.c.l.b16 %v142
  %v621 = vunpack.c.h.b16 %v142
  %v622 = vunpack.c.l.b16 %v143
  %v623 = vunpack.c.h.b16 %v143
  %v624 = vunpack.c.l.b16 %v144
  %v625 = vunpack.c.h.b16 %v144
  %v626 = vunpack.c.l.b16 %v145
  %v627 = vunpack.c.h.b16 %v145
  %v628 = vunpack.c.l.b16 %v146
  %v629 = vunpack.c.h.b16 %v146
  %v630 = vunpack.c.l.b16 %v147
  %v631 = vunpack.c.h.b16 %v147
  %v632 = vunpack.c.l.b16 %v148
  %v633 = vunpack.c.h.b16 %v148
  %v634 = vunpack.c.l.b16 %v149
  %v635 = vunpack.c.h.b16 %v149
  %v636 = vunpack.c.l.b16 %v150
  %v637 = vunpack.c.h.b16 %v150
  %v638 = vunpack.c.l.b16 %v151
  %v639 = vunpack.c.h.b16 %v151
  %v640 = vunpack.c.l.b16 %v152
  %v641 = vunpack.c.h.b16 %v152
  %v642 = vunpack.c.l.b16 %v153
  %v643 = vunpack.c.h.b16 %v153
  %v644 = vunpack.c.l.b16 %v154
  %v645 = vunpack.c.h.b16 %v154
  %v646 = vunpack.c.l.b16 %v155
  %v647 = vunpack.c.h.b16 %v155
  %v648 = vunpack.c.l.b16 %v156
  %v649 = vunpack.c.h.b16 %v156
  %v650 = vunpack.c.l.b16 %v157
  %v651 = vunpack.c.h.b16 %v157
  %v652 = vunpack.c.l.b16 %v158
  %v653 = vunpack.c.h.b16 %v158
  %v654 = vunpack.c.l.b16 %v159
  %v655 = vunpack.c.h.b16 %v159
  %v656 = vunpack.c.l.b16 %v160
  %v657 = vunpack.c.h.b16 %v160
  %v658 = vunpack.c.l.b16 %v161
  %v659 = vunpack.c.h.b16 %v161
  %v660 = vunpack.c.l.b16 %v162
  %v661 = vunpack.c.h.b16 %v162
  %v662 = vunpack.c.l.b16 %v163
  %v663 = vunpack.c.h.b16 %v163
  %v664 = vunpack.c.l.b16 %v164
  %v665 = vunpack.c.h.b16 %v164
  %v666 = vunpack.c.l.b16 %v165
  %v667 = vunpack.c.h.b16 %v165
  %v668 = vunpack.c.l.b16 %v166
  %v669 = vunpack.c.h.b16 %v166
  %v670 = vunpack.c.l.b16 %v167
  %v671 = vunpack.c.h.b16 %v167
  %v672 = vunpack.c.l.b16 %v168
  %v673 = vunpack.c.h.b16 %v168
  %v674 = vunpack.c.l.b16 %v169
  %v675 = vunpack.c.h.b16 %v169
  %v676 = vunpack.c.l.b16 %v170
  %v677 = vunpack.c.h.b16 %v170
  %v678 = vunpack.c.l.b16 %v171
  %v679 = vunpack.c.h.b16 %v171
  %v680 = vunpack.c.l.b16 %v172
  %v681 = vunpack.c.h.b16 %v172
  %v682 = vunpack.c.l.b16 %v173
  %v683 = vunpack.c.h.b16 %v173
  %v684 = vunpack.c.l.b16 %v174
  %v685 = vunpack.c.h.b16 %v174
  %v686 = vunpack.c.l.b16 %v175
  %v687 = vunpack.c.h.b16 %v175
  %v688 = vunpack.c.l.b16 %v176
  %v689 = vunpack.c.h.b16 %v176
  %v690 = vunpack.c.l.b16 %v177
  %v691 = vunpack.c.h.b16 %v177
  %v692 = vunpack.c.l.b16 %v178
  %v693 = vunpack.c.h.b16 %v178
  %v694 = vunpack.c.l.b16 %v179
  %v695 = vunpack.c.h.b16 %v179
  %v696 = vunpack.c.l.b16 %v180
  %v697 = vunpack.c.h.b16 %v180
  %v698 = vunpack.c.l.b16 %v181
  %v699 = vunpack.c.h.b16 %v181
  %v700 = vunpack.c.l.b16 %v182
  %v701 = vunpack.c.h.b16 %v182
  %v702 = vunpack.c.l.b16 %v183
  %v703 = vunpack.c.h.b16 %v183
  %v704 = vunpack.c.l.b16 %v184
  %v705 = vunpack.c.h.b16 %v184
  %v706 = vunpack.c.l.b16 %v185
  %v707 = vunpack.c.h.b16 %v185
  %v708 = vunpack.c.l.b16 %v186
  %v709 = vunpack.c.h.b16 %v186
  %v710 = vunpack.c.l.b16 %v187
  %v711 = vunpack.c.h.b16 %v187
  %v712 = vunpack.c.l.b16 %v188
  %v713 = vunpack.c.h.b16 %v188
  %v714 = vunpack.c.l.b16 %v189
  %v715 = vunpack.c.h.b16 %v189
  %v716 = vunpack.c.l.b16 %v190
  %v717 = vunpack.c.h.b16 %v190
  %v718 = vunpack.c.l.b16 %v191
  %v719 = vunpack.c.h.b16 %v191
  %v720 = vunpack.c.l.b16 %v192
  %v721 = vunpack.c.h.b16 %v192
  %v722 = vunpack.c.l.b16 %v193
  %v723 = vunpack.c.h.b16 %v193
  %v724 = vunpack.c.l.b16 %v194
  %v725 = vunpack.c.h.b16 %v194
  %v726 = vunpack.c.l.b16 %v195
  %v727 = vunpack.c.h.b16 %v195
  %v728 = vunpack.c.l.b16 %v196
  %v729 = vunpack.c.h.b16 %v196
  %v730 = vunpack.c.l.b16 %v197
  %v731 = vunpack.c.h.b16 %v197
  %v732 = vunpack.c.l.b16 %v198
  %v733 = vunpack.c.h.b16 %v198
  %v734 = vunpack.c.l.b16 %v199
  %v735 = vunpack.c.h.b16 %v199
  %v736 = vunpack.c.l.b16 %v200
  %v737 = vunpack.c.h.b16 %v200
  %v738 = vunpack.c.l.b16 %v201
  %v739 = vunpack.c.h.b16 %v201
  %v740 = vunpack.c.l.b16 %v202
  %v741 = vunpack.c.h.b16 %v202
  %v742 = vunpack.c.l.b16 %v203
  %v743 = vunpack.c.h.b16 %v203
  %v744 = vunpack.c.l.b16 %v204
  %v745 = vunpack.c.h.b16 %v204
  %v746 = vunpack.c.l.b16 %v205
  %v747 = vunpack.c.h.b16 %v205
  %v748 = vunpack.c.l.b16 %v206
  %v749 = vunpack.c.h.b16 %v206
  %v750 = vunpack.c.l.b16 %v207
  %v751 = vunpack.c.h.b16 %v207
  %v752 = vunpack.c.l.b16 %v208
  %v753 = vunpack.c.h.b16 %v208
  %v754 = vunpack.c.l.b16 %v209
  %v755 = vunpack.c.h.b16 %v209
  %v756 = vunpack.c.l.b16 %v210
  %v757 = vunpack.c.h.b16 %v210
  %v758 = vunpack.c.l.b16 %v211
  %v759 = vunpack.c.h.b16 %v211
  %v760 = vunpack.c.l.b16 %v212
  %v761 = vunpack.c.h.b16 %v212
  %v762 = vunpack.c.l.b16 %v213
  %v763 = vunpack.c.h.b16 %v213
  %v764 = vunpack.c.l.b16 %v214
  %v765 = vunpack.c.h.b16 %v214
  %v766 = vunpack.c.l.b16 %v215
  %v767 = vunpack.c.h.b16 %v215
  %v768 = vunpack.c.l.b16 %v216
  %v769 = vunpack.c.h.b16 %v216
  %v770 = vunpack.c.l.b16 %v217
  %v771 = vunpack.c.h.b16 %v217
  %v772 = vunpack.c.l.b16 %v218
  %v773 = vunpack.c.h.b16 %v218
  %v774 = vunpack.c.l.b16 %v219
  %v775 = vunpack.c.h.b16 %v219
  %v776 = vunpack.c.l.b16 %v220
  %v777 = vunpack.c.h.b16 %v220
  %v778 = vunpack.c.l.b16 %v221
  %v779 = vunpack.c.h.b16 %v221
  %v780 = vunpack.c.l.b16 %v222
  %v781 = vunpack.c.h.b16 %v222
  %v782 = vunpack.c.l.b16 %v223
  %v783 = vunpack.c.h.b16 %v223
  %v784 = vunpack.c.l.b16 %v224
  %v785 = vunpack.c.h.b16 %v224
  %v786 = vunpack.c.l.b16 %v225
  %v787 = vunpack.c.h.b16 %v225
  %v788 = vunpack.c.l.b16 %v226
  %v789 = vunpack.c.h.b16 %v226
  %v790 = vunpack.c.l.b16 %v227
  %v791 = vunpack.c.h.b16 %v227
  %v792 = vunpack.c.l.b16 %v228
  %v793 = vunpack.c.h.b16 %v228
  %v794 = vunpack.c.l.b16 %v229
  %v795 = vunpack.c.h.b16 %v229
  %v796 = vunpack.c.l.b16 %v230
  %v797 = vunpack.c.h.b16 %v230
  %v798 = vunpack.c.l.b16 %v231
  %v799 = vunpack.c.h.b16 %v231
  %v800 = vunpack.c.l.b16 %v232
  %v801 = vunpack.c.h.b16 %v232
  %v802 = vunpack.c.l.b16 %v233
  %v803 = vunpack.c.h.b16 %v233
  %v804 = vunpack.c.l.b16 %v234
  %v805 = vunpack.c.h.b16 %v234
  %v806 = vunpack.c.l.b16 %v235
  %v807 = vunpack.c.h.b16 %v235
  %v808 = vunpack.c.l.b16 %v236
  %v809 = vunpack.c.h.b16 %v236
  %v810 = vunpack.c.l.b16 %v237
  %v811 = vunpack.c.h.b16 %v237
  %v812 = vunpack.c.l.b16 %v238
  %v813 = vunpack.c.h.b16 %v238
  %v814 = vunpack.c.l.b16 %v239
  %v815 = vunpack.c.h.b16 %v239
  %v816 = vunpack.c.l.b16 %v240
  %v817 = vunpack.c.h.b16 %v240
  %v818 = vunpack.c.l.b16 %v241
  %v819 = vunpack.c.h.b16 %v241
  %v820 = vunpack.c.l.b16 %v242
  %v821 = vunpack.c.h.b16 %v242
  %v822 = vunpack.c.l.b16 %v243
  %v823 = vunpack.c.h.b16 %v243
  %v824 = vunpack.c.l.b16 %v244
  %v825 = vunpack.c.h.b16 %v244
  %v826 = vunpack.c.l.b16 %v245
  %v827 = vunpack.c.h.b16 %v245
  %v828 = vunpack.c.l.b16 %v246
  %v829 = vunpack.c.h.b16 %v246
  %v830 = vunpack.c.l.b16 %v247
  %v831 = vunpack.c.h.b16 %v247
  %v832 = vunpack.c.l.b16 %v248
  %v833 = vunpack.c.h.b16 %v248
  %v834 = vunpack.c.l.b16 %v249
  %v835 = vunpack.c.h.b16 %v249
  %v836 = vunpack.c.l.b16 %v250
  %v837 = vunpack.c.h.b16 %v250
  %v838 = vunpack.c.l.b16 %v251
  %v839 = vunpack.c.h.b16 %v251
  %v840 = vunpack.c.l.b16 %v252
  %v841 = vunpack.c.h.b16 %v252
  %v842 = vunpack.c.l.b16 %v253
  %v843 = vunpack.c.h.b16 %v253
  %v844 = vunpack.c.l.b16 %v254
  %v845 = vunpack.c.h.b16 %v254
  %v846 = vunpack.c.l.b16 %v255
  %v847 = vunpack.c.h.b16 %v255
  %v848 = vunpack.c.l.b16 %v256
  %v849 = vunpack.c.h.b16 %v256
  %v850 = vunpack.c.l.b16 %v257
  %v851 = vunpack.c.h.b16 %v257
  %v852 = vunpack.c.l.b16 %v258
  %v853 = vunpack.c.h.b16 %v258
  %v854 = vunpack.c.l.b16 %v259
  %v855 = vunpack.c.h.b16 %v259
  %v856 = vunpack.c.l.b16 %v260
  %v857 = vunpack.c.h.b16 %v260
  %v858 = vunpack.c.l.b16 %v261
  %v859 = vunpack.c.h.b16 %v261
  %v860 = vunpack.c.l.b16 %v262
  %v861 = vunpack.c.h.b16 %v262
  %v862 = vunpack.c.l.b16 %v263
  %v863 = vunpack.c.h.b16 %v263
  %v864 = vunpack.c.l.b16 %v264
  %v865 = vunpack.c.h.b16 %v264
  %v866 = vunpack.c.l.b16 %v265
  %v867 = vunpack.c.h.b16 %v265
  %v868 = vunpack.c.l.b16 %v266
  %v869 = vunpack.c.h.b16 %v266
  %v870 = vunpack.c.l.b16 %v267
  %v871 = vunpack.c.h.b16 %v267
  %v872 = vunpack.c.l.b16 %v268
  %v873 = vunpack.c.h.b16 %v268
  %v874 = vunpack.c.l.b16 %v269
  %v875 = vunpack.c.h.b16 %v269
  %v876 = vunpack.c.l.b16 %v270
  %v877 = vunpack.c.h.b16 %v270
  %v878 = vunpack.c.l.b16 %v271
  %v879 = vunpack.c.h.b16 %v271
  %v880 = vunpack.c.l.b16 %v272
  %v881 = vunpack.c.h.b16 %v272
  %v882 = vunpack.c.l.b16 %v273
  %v883 = vunpack.c.h.b16 %v273
  %v884 = vpack.c.b16 %v496, %v492
  %v885 = vpack.c.b16 %v497, %v493
  %v886 = vpack.c.b16 %v498, %v494
  %v887 = vpack.c.b16 %v499, %v495
  %v888 = vpack.c.b16 %v504, %v500
  %v889 = vpack.c.b16 %v505, %v501
  %v890 = vpack.c.b16 %v506, %v502
  %v891 = vpack.c.b16 %v507, %v503
  %v892 = vpack.c.b16 %v512, %v508
  %v893 = vpack.c.b16 %v513, %v509
  %v894 = vpack.c.b16 %v514, %v510
  %v895 = vpack.c.b16 %v515, %v511
  %v896 = vpack.c.b16 %v520, %v516
  %v897 = vpack.c.b16 %v521, %v517
  %v898 = vpack.c.b16 %v522, %v518
  %v899 = vpack.c.b16 %v523, %v519
  %v900 = vpack.c.b16 %v528, %v524
  %v901 = vpack.c.b16 %v529, %v525
  %v902 = vpack.c.b16 %v530, %v526
  %v903 = vpack.c.b16 %v531, %v527
  %v904 = vpack.c.b16 %v536, %v532
  %v905 = vpack.c.b16 %v537, %v533
  %v906 = vpack.c.b16 %v538, %v534
  %v907 = vpack.c.b16 %v539, %v535
  %v908 = vpack.c.b16 %v544, %v540
  %v909 = vpack.c.b16 %v545, %v541
  %v910 = vpack.c.b16 %v546, %v542
  %v911 = vpack.c.b16 %v547, %v543
  %v912 = vpack.c.b16 %v552, %v548
  %v913 = vpack.c.b16 %v553, %v549
  %v914 = vpack.c.b16 %v554, %v550
  %v915 = vpack.c.b16 %v555, %v551
  %v916 = vpack.c.b16 %v560, %v556
  %v917 = vpack.c.b16 %v561, %v557
  %v918 = vpack.c.b16 %v562, %v558
  %v919 = vpack.c.b16 %v563, %v559
  %v920 = vpack.c.b16 %v568, %v564
  %v921 = vpack.c.b16 %v569, %v565
  %v922 = vpack.c.b16 %v570, %v566
  %v923 = vpack.c.b16 %v571, %v567
  %v924 = vpack.c.b16 %v576, %v572
  %v925 = vpack.c.b16 %v577, %v573
  %v926 = vpack.c.b16 %v578, %v574
  %v927 = vpack.c.b16 %v579, %v575
  %v928 = vpack.c.b16 %v584, %v580
  %v929 = vpack.c.b16 %v585, %v581
  %v930 = vpack.c.b16 %v586, %v582
  %v931 = vpack.c.b16 %v587, %v583
  %v932 = vpack.c.b16 %v592, %v588
  %v933 = vpack.c.b16 %v593, %v589
  %v934 = vpack.c.b16 %v594, %v590
  %v935 = vpack.c.b16 %v595, %v591
  %v936 = vpack.c.b16 %v600, %v596
  %v937 = vpack.c.b16 %v601, %v597
  %v938 = vpack.c.b16 %v602, %v598
  %v939 = vpack.c.b16 %v603, %v599
  %v940 = vpack.c.b16 %v608, %v604
  %v941 = vpack.c.b16 %v609, %v605
  %v942 = vpack.c.b16 %v610, %v606
  %v943 = vpack.c.b16 %v611, %v607
  %v944 = vpack.c.b16 %v616, %v612
  %v945 = vpack.c.b16 %v617, %v613
  %v946 = vpack.c.b16 %v618, %v614
  %v947 = vpack.c.b16 %v619, %v615
  %v948 = vpack.c.b16 %v624, %v620
  %v949 = vpack.c.b16 %v625, %v621
  %v950 = vpack.c.b16 %v626, %v622
  %v951 = vpack.c.b16 %v627, %v623
  %v952 = vpack.c.b16 %v632, %v628
  %v953 = vpack.c.b16 %v633, %v629
  %v954 = vpack.c.b16 %v634, %v630
  %v955 = vpack.c.b16 %v635, %v631
  %v956 = vpack.c.b16 %v640, %v636
  %v957 = vpack.c.b16 %v641, %v637
  %v958 = vpack.c.b16 %v642, %v638
  %v959 = vpack.c.b16 %v643, %v639
  %v960 = vpack.c.b16 %v648, %v644
  %v961 = vpack.c.b16 %v649, %v645
  %v962 = vpack.c.b16 %v650, %v646
  %v963 = vpack.c.b16 %v651, %v647
  %v964 = vpack.c.b16 %v656, %v652
  %v965 = vpack.c.b16 %v657, %v653
  %v966 = vpack.c.b16 %v658, %v654
  %v967 = vpack.c.b16 %v659, %v655
  %v968 = vpack.c.b16 %v664, %v660
  %v969 = vpack.c.b16 %v665, %v661
  %v970 = vpack.c.b16 %v666, %v662
  %v971 = vpack.c.b16 %v667, %v663
  %v972 = vpack.c.b16 %v672, %v668
  %v973 = vpack.c.b16 %v673, %v669
  %v974 = vpack.c.b16 %v674, %v670
  %v975 = vpack.c.b16 %v675, %v671
  %v976 = vpack.c.b16 %v680, %v676
  %v977 = vpack.c.b16 %v681, %v677
  %v978 = vpack.c.b16 %v682, %v678
  %v979 = vpack.c.b16 %v683, %v679
  %v980 = vpack.c.b16 %v688, %v684
  %v981 = vpack.c.b16 %v689, %v685
  %v982 = vpack.c.b16 %v690, %v686
  %v983 = vpack.c.b16 %v691, %v687
  %v984 = vpack.c.b16 %v696, %v692
  %v985 = vpack.c.b16 %v697, %v693
  %v986 = vpack.c.b16 %v698, %v694
  %v987 = vpack.c.b16 %v699, %v695
  %v988 = vpack.c.b16 %v704, %v700
  %v989 = vpack.c.b16 %v705, %v701
  %v990 = vpack.c.b16 %v706, %v702
  %v991 = vpack.c.b16 %v707, %v703
  %v992 = vpack.c.b16 %v712, %v708
  %v993 = vpack.c.b16 %v713, %v709
  %v994 = vpack.c.b16 %v714, %v710
  %v995 = vpack.c.b16 %v715, %v711
  %v996 = vpack.c.b16 %v720, %v716
  %v997 = vpack.c.b16 %v721, %v717
  %v998 = vpack.c.b16 %v722, %v718
  %v999 = vpack.c.b16 %v723, %v719
  %v1000 = vpack.c.b16 %v728, %v724
  %v1001 = vpack.c.b16 %v729, %v725
  %v1002 = vpack.c.b16 %v730, %v726
  %v1003 = vpack.c.b16 %v731, %v727
  %v1004 = vpack.c.b16 %v736, %v732
  %v1005 = vpack.c.b16 %v737, %v733
  %v1006 = vpack.c.b16 %v738, %v734
  %v1007 = vpack.c.b16 %v739, %v735
  %v1008 = vpack.c.b16 %v744, %v740
  %v1009 = vpack.c.b16 %v745, %v741
  %v1010 = vpack.c.b16 %v746, %v742
  %v1011 = vpack.c.b16 %v747, %v743
  %v1012 = vpack.c.b16 %v752, %v748
  %v1013 = vpack.c.b16 %v753, %v749
  %v1014 = vpack.c.b16 %v754, %v750
  %v1015 = vpack.c.b16 %v755, %v751
  %v1016 = vpack.c.b16 %v760, %v756
  %v1017 = vpack.c.b16 %v761, %v757
  %v1018 = vpack.c.b16 %v762, %v758
  %v1019 = vpack.c.b16 %v763, %v759
  %v1020 = vpack.c.b16 %v768, %v764
  %v1021 = vpack.c.b16 %v769, %v765
  %v1022 = vpack.c.b16 %v770, %v766
  %v1023 = vpack.c.b16 %v771, %v767
  %v1024 = vpack.c.b16 %v776, %v772
  %v1025 = vpack.c.b16 %v777, %v773
  %v1026 = vpack.c.b16 %v778, %v774
  %v1027 = vpack.c.b16 %v779, %v775
  %v1028 = vpack.c.b16 %v784, %v780
  %v1029 = vpack.c.b16 %v785, %v781
  %v1030 = vpack.c.b16 %v786, %v782
  %v1031 = vpack.c.b16 %v787, %v783
  %v1032 = vpack.c.b16 %v792, %v788
  %v1033 = vpack.c.b16 %v793, %v789
  %v1034 = vpack.c.b16 %v794, %v790
  %v1035 = vpack.c.b16 %v795, %v791
  %v1036 = vpack.c.b16 %v800, %v796
  %v1037 = vpack.c.b16 %v801, %v797
  %v1038 = vpack.c.b16 %v802, %v798
  %v1039 = vpack.c.b16 %v803, %v799
  %v1040 = vpack.c.b16 %v808, %v804
  %v1041 = vpack.c.b16 %v809, %v805
  %v1042 = vpack.c.b16 %v810, %v806
  %v1043 = vpack.c.b16 %v811, %v807
  %v1044 = vpack.c.b16 %v816, %v812
  %v1045 = vpack.c.b16 %v817, %v813
  %v1046 = vpack.c.b16 %v818, %v814
  %v1047 = vpack.c.b16 %v819, %v815
  %v1048 = vpack.c.b16 %v824, %v820
  %v1049 = vpack.c.b16 %v825, %v821
  %v1050 = vpack.c.b16 %v826, %v822
  %v1051 = vpack.c.b16 %v827, %v823
  %v1052 = vpack.c.b16 %v832, %v828
  %v1053 = vpack.c.b16 %v833, %v829
  %v1054 = vpack.c.b16 %v834, %v830
  %v1055 = vpack.c.b16 %v835, %v831
  %v1056 = vpack.c.b16 %v840, %v836
  %v1057 = vpack.c.b16 %v841, %v837
  %v1058 = vpack.c.b16 %v842, %v838
  %v1059 = vpack.c.b16 %v843, %v839
  %v1060 = vpack.c.b16 %v848, %v844
  %v1061 = vpack.c.b16 %v849, %v845
  %v1062 = vpack.c.b16 %v850, %v846
  %v1063 = vpack.c.b16 %v851, %v847
  %v1064 = vpack.c.b16 %v856, %v852
  %v1065 = vpack.c.b16 %v857, %v853
  %v1066 = vpack.c.b16 %v858, %v854
  %v1067 = vpack.c.b16 %v859, %v855
  %v1068 = vpack.c.b16 %v864, %v860
  %v1069 = vpack.c.b16 %v865, %v861
  %v1070 = vpack.c.b16 %v866, %v862
  %v1071 = vpack.c.b16 %v867, %v863
  %v1072 = vpack.c.b16 %v872, %v868
  %v1073 = vpack.c.b16 %v873, %v869
  %v1074 = vpack.c.b16 %v874, %v870
  %v1075 = vpack.c.b16 %v875, %v871
  %v1076 = vpack.c.b16 %v880, %v876
  %v1077 = vpack.c.b16 %v881, %v877
  %v1078 = vpack.c.b16 %v882, %v878
  %v1079 = vpack.c.b16 %v883, %v879
  %vm1276 = vcmask 130048
  %v1278 = vsel %vm1276, %v77, 0
  %1280 = vmatprep.subr.bf16.mxu0 %v885
  %1281 = vmatpush1.bf16.msra.mxu0 %v884
  %1282 = vmatprep.subr.bf16.mxu0 %v889
  %1283 = vmatpush1.bf16.msra.mxu0 %v888
  %1284 = vmatprep.subr.bf16.mxu0 %v893
  %1285 = vmatpush1.bf16.msra.mxu0 %v892
  %1286 = vmatprep.subr.bf16.mxu0 %v897
  %1287 = vmatpush1.bf16.msra.mxu0 %v896
  %1288 = vmatprep.subr.bf16.mxu0 %v901
  %1289 = vmatpush1.bf16.msra.mxu0 %v900
  %1290 = vmatprep.subr.bf16.mxu0 %v905
  %1291 = vmatpush1.bf16.msra.mxu0 %v904
  %1292 = vmatprep.subr.bf16.mxu0 %v909
  %1293 = vmatpush1.bf16.msra.mxu0 %v908
  %1294 = vmatprep.subr.bf16.mxu0 %v913
  %1295 = vmatpush1.bf16.msra.mxu0 %v912
  %1296 = vmatprep.subr.bf16.mxu0 %v917
  %1297 = vmatpush1.bf16.msra.mxu0 %v916
  %1298 = vmatprep.subr.bf16.mxu0 %v921
  %1299 = vmatpush1.bf16.msra.mxu0 %v920
  %1300 = vmatprep.subr.bf16.mxu0 %v925
  %1301 = vmatpush1.bf16.msra.mxu0 %v924
  %1302 = vmatprep.subr.bf16.mxu0 %v929
  %1303 = vmatpush1.bf16.msra.mxu0 %v928
  %1304 = vmatprep.subr.bf16.mxu0 %v933
  %1305 = vmatpush1.bf16.msra.mxu0 %v932
  %1306 = vmatprep.subr.bf16.mxu0 %v937
  %1307 = vmatpush1.bf16.msra.mxu0 %v936
  %1308 = vmatprep.subr.bf16.mxu0 %v941
  %1309 = vmatpush1.bf16.msra.mxu0 %v940
  %1310 = vmatprep.subr.bf16.mxu0 %v945
  %1311 = vmatpush1.bf16.msra.mxu0 %v944
  %1312 = vmatprep.mubr.bf16.mxu0 %v72
  %1313 = vmatmul.mubr.bf16.gmra.mrb[0].mxu0 %v71
  %v1314 = vpop.f32.mrb[0].mxu0
  %v1315 = vadd.f32 %v279, %v1314
  %v1316 = vpop.f32.mrb[0].mxu0
  %v1317 = vadd.f32 %v283, %v1316
  %v1318 = vpop.f32.mrb[0].mxu0
  %v1319 = vpop.f32.mrb[0].mxu0
  %1320 = vdwg.mxu0
  %1321 = vmatprep.subr.bf16.mxu0 %v949
  %1322 = vmatpush1.bf16.msra.mxu0 %v948
  %1323 = vmatprep.subr.bf16.mxu0 %v953
  %1324 = vmatpush1.bf16.msra.mxu0 %v952
  %1325 = vmatprep.subr.bf16.mxu0 %v957
  %1326 = vmatpush1.bf16.msra.mxu0 %v956
  %1327 = vmatprep.subr.bf16.mxu0 %v961
  %1328 = vmatpush1.bf16.msra.mxu0 %v960
  %1329 = vmatprep.subr.bf16.mxu0 %v965
  %1330 = vmatpush1.bf16.msra.mxu0 %v964
  %1331 = vmatprep.subr.bf16.mxu0 %v969
  %1332 = vmatpush1.bf16.msra.mxu0 %v968
  %1333 = vmatprep.subr.bf16.mxu0 %v973
  %1334 = vmatpush1.bf16.msra.mxu0 %v972
  %1335 = vmatprep.subr.bf16.mxu0 %v977
  %1336 = vmatpush1.bf16.msra.mxu0 %v976
  %1337 = vmatprep.subr.bf16.mxu0 %v981
  %1338 = vmatpush1.bf16.msra.mxu0 %v980
  %1339 = vmatprep.subr.bf16.mxu0 %v985
  %1340 = vmatpush1.bf16.msra.mxu0 %v984
  %1341 = vmatprep.subr.bf16.mxu0 %v989
  %1342 = vmatpush1.bf16.msra.mxu0 %v988
  %1343 = vmatprep.subr.bf16.mxu0 %v993
  %1344 = vmatpush1.bf16.msra.mxu0 %v992
  %1345 = vmatprep.subr.bf16.mxu0 %v997
  %1346 = vmatpush1.bf16.msra.mxu0 %v996
  %1347 = vmatprep.subr.bf16.mxu0 %v1001
  %1348 = vmatpush1.bf16.msra.mxu0 %v1000
  %1349 = vmatprep.subr.bf16.mxu0 %v1005
  %1350 = vmatpush1.bf16.msra.mxu0 %v1004
  %1351 = vmatprep.subr.bf16.mxu0 %v1009
  %1352 = vmatpush1.bf16.msra.mxu0 %v1008
  %1353 = vmatprep.mubr.bf16.mxu0 %v74
  %1354 = vmatmul.mubr.bf16.gmra.mrb[0].mxu0 %v73
  %v1355 = vpop.f32.mrb[0].mxu0
  %v1356 = vadd.f32 %v1315, %v1355
  %v1357 = vpop.f32.mrb[0].mxu0
  %v1358 = vadd.f32 %v1317, %v1357
  %v1359 = vpop.f32.mrb[0].mxu0
  %v1360 = vpop.f32.mrb[0].mxu0
  %1361 = vdwg.mxu0
  %1362 = vmatprep.subr.bf16.mxu0 %v1013
  %1363 = vmatpush1.bf16.msra.mxu0 %v1012
  %1364 = vmatprep.subr.bf16.mxu0 %v1017
  %1365 = vmatpush1.bf16.msra.mxu0 %v1016
  %1366 = vmatprep.subr.bf16.mxu0 %v1021
  %1367 = vmatpush1.bf16.msra.mxu0 %v1020
  %1368 = vmatprep.subr.bf16.mxu0 %v1025
  %1369 = vmatpush1.bf16.msra.mxu0 %v1024
  %1370 = vmatprep.subr.bf16.mxu0 %v1029
  %1371 = vmatpush1.bf16.msra.mxu0 %v1028
  %1372 = vmatprep.subr.bf16.mxu0 %v1033
  %1373 = vmatpush1.bf16.msra.mxu0 %v1032
  %1374 = vmatprep.subr.bf16.mxu0 %v1037
  %1375 = vmatpush1.bf16.msra.mxu0 %v1036
  %1376 = vmatprep.subr.bf16.mxu0 %v1041
  %1377 = vmatpush1.bf16.msra.mxu0 %v1040
  %1378 = vmatprep.subr.bf16.mxu0 %v1045
  %1379 = vmatpush1.bf16.msra.mxu0 %v1044
  %1380 = vmatprep.subr.bf16.mxu0 %v1049
  %1381 = vmatpush1.bf16.msra.mxu0 %v1048
  %1382 = vmatprep.subr.bf16.mxu0 %v1053
  %1383 = vmatpush1.bf16.msra.mxu0 %v1052
  %1384 = vmatprep.subr.bf16.mxu0 %v1057
  %1385 = vmatpush1.bf16.msra.mxu0 %v1056
  %1386 = vmatprep.subr.bf16.mxu0 %v1061
  %1387 = vmatpush1.bf16.msra.mxu0 %v1060
  %1388 = vmatprep.subr.bf16.mxu0 %v1065
  %1389 = vmatpush1.bf16.msra.mxu0 %v1064
  %1390 = vmatprep.subr.bf16.mxu0 %v1069
  %1391 = vmatpush1.bf16.msra.mxu0 %v1068
  %1392 = vmatprep.subr.bf16.mxu0 %v1073
  %1393 = vmatpush1.bf16.msra.mxu0 %v1072
  %1394 = vmatprep.mubr.bf16.mxu0 %v76
  %1395 = vmatmul.mubr.bf16.gmra.mrb[0].mxu0 %v75
  %v1396 = vpop.f32.mrb[0].mxu0
  %v1397 = vadd.f32 %v1356, %v1396
  %v1398 = vpop.f32.mrb[0].mxu0
  %v1399 = vadd.f32 %v1358, %v1398
  %v1400 = vpop.f32.mrb[0].mxu0
  %v1401 = vpop.f32.mrb[0].mxu0
  %1402 = vdwg.mxu0
  %1403 = vmatprep.subr.bf16.mxu0 %v1077
  %1404 = vmatpush1.bf16.msra.mxu0 %v1076
  %1405 = vmatprep.subr.bf16.mxu0 0
  %1406 = vmatpush1.bf16.msra.mxu0 0
  %1407 = vmatprep.subr.bf16.mxu0 0
  %1408 = vmatpush1.bf16.msra.mxu0 0
  %1409 = vmatprep.subr.bf16.mxu0 0
  %1410 = vmatpush1.bf16.msra.mxu0 0
  %1411 = vmatprep.subr.bf16.mxu0 0
  %1412 = vmatpush1.bf16.msra.mxu0 0
  %1413 = vmatprep.subr.bf16.mxu0 0
  %1414 = vmatpush1.bf16.msra.mxu0 0
  %1415 = vmatprep.subr.bf16.mxu0 0
  %1416 = vmatpush1.bf16.msra.mxu0 0
  %1417 = vmatprep.subr.bf16.mxu0 0
  %1418 = vmatpush1.bf16.msra.mxu0 0
  %1419 = vmatprep.subr.bf16.mxu0 0
  %1420 = vmatpush1.bf16.msra.mxu0 0
  %1421 = vmatprep.subr.bf16.mxu0 0
  %1422 = vmatpush1.bf16.msra.mxu0 0
  %1423 = vmatprep.subr.bf16.mxu0 0
  %1424 = vmatpush1.bf16.msra.mxu0 0
  %1425 = vmatprep.subr.bf16.mxu0 0
  %1426 = vmatpush1.bf16.msra.mxu0 0
  %1427 = vmatprep.subr.bf16.mxu0 0
  %1428 = vmatpush1.bf16.msra.mxu0 0
  %1429 = vmatprep.subr.bf16.mxu0 0
  %1430 = vmatpush1.bf16.msra.mxu0 0
  %1431 = vmatprep.subr.bf16.mxu0 0
  %1432 = vmatpush1.bf16.msra.mxu0 0
  %1433 = vmatprep.subr.bf16.mxu0 0
  %1434 = vmatpush1.bf16.msra.mxu0 0
  %1435 = vmatprep.mubr.bf16.mxu0 0
  %1436 = vmatmul.mubr.bf16.gmra.mrb[0].mxu0 %v1278
  %v1437 = vpop.f32.mrb[0].mxu0
  %v1438 = vadd.f32 %v1397, %v1437
  %v1439 = vpop.f32.mrb[0].mxu0
  %v1440 = vadd.f32 %v1399, %v1439
  %v1441 = vpop.f32.mrb[0].mxu0
  %v1442 = vpop.f32.mrb[0].mxu0
  %1443 = vdwg.mxu0
  %1444 = vmatprep.subr.bf16.mxu0 %v887
  %1445 = vmatpush1.bf16.msra.mxu0 %v886
  %1446 = vmatprep.subr.bf16.mxu0 %v891
  %1447 = vmatpush1.bf16.msra.mxu0 %v890
  %1448 = vmatprep.subr.bf16.mxu0 %v895
  %1449 = vmatpush1.bf16.msra.mxu0 %v894
  %1450 = vmatprep.subr.bf16.mxu0 %v899
  %1451 = vmatpush1.bf16.msra.mxu0 %v898
  %1452 = vmatprep.subr.bf16.mxu0 %v903
  %1453 = vmatpush1.bf16.msra.mxu0 %v902
  %1454 = vmatprep.subr.bf16.mxu0 %v907
  %1455 = vmatpush1.bf16.msra.mxu0 %v906
  %1456 = vmatprep.subr.bf16.mxu0 %v911
  %1457 = vmatpush1.bf16.msra.mxu0 %v910
  %1458 = vmatprep.subr.bf16.mxu0 %v915
  %1459 = vmatpush1.bf16.msra.mxu0 %v914
  %1460 = vmatprep.subr.bf16.mxu0 %v919
  %1461 = vmatpush1.bf16.msra.mxu0 %v918
  %1462 = vmatprep.subr.bf16.mxu0 %v923
  %1463 = vmatpush1.bf16.msra.mxu0 %v922
  %1464 = vmatprep.subr.bf16.mxu0 %v927
  %1465 = vmatpush1.bf16.msra.mxu0 %v926
  %1466 = vmatprep.subr.bf16.mxu0 %v931
  %1467 = vmatpush1.bf16.msra.mxu0 %v930
  %1468 = vmatprep.subr.bf16.mxu0 %v935
  %1469 = vmatpush1.bf16.msra.mxu0 %v934
  %1470 = vmatprep.subr.bf16.mxu0 %v939
  %1471 = vmatpush1.bf16.msra.mxu0 %v938
  %1472 = vmatprep.subr.bf16.mxu0 %v943
  %1473 = vmatpush1.bf16.msra.mxu0 %v942
  %1474 = vmatprep.subr.bf16.mxu0 %v947
  %1475 = vmatpush1.bf16.msra.mxu0 %v946
  %1476 = vmatprep.mubr.bf16.mxu0 %v72
  %1477 = vmatmul.mubr.bf16.gmra.mrb[0].mxu0 %v71
  %v1478 = vpop.f32.mrb[0].mxu0
  %v1479 = vadd.f32 %v287, %v1478
  %v1480 = vpop.f32.mrb[0].mxu0
  %v1481 = vadd.f32 %v291, %v1480
  %v1482 = vpop.f32.mrb[0].mxu0
  %v1483 = vpop.f32.mrb[0].mxu0
  %1484 = vdwg.mxu0
  %1485 = vmatprep.subr.bf16.mxu0 %v951
  %1486 = vmatpush1.bf16.msra.mxu0 %v950
  %1487 = vmatprep.subr.bf16.mxu0 %v955
  %1488 = vmatpush1.bf16.msra.mxu0 %v954
  %1489 = vmatprep.subr.bf16.mxu0 %v959
  %1490 = vmatpush1.bf16.msra.mxu0 %v958
  %1491 = vmatprep.subr.bf16.mxu0 %v963
  %1492 = vmatpush1.bf16.msra.mxu0 %v962
  %1493 = vmatprep.subr.bf16.mxu0 %v967
  %1494 = vmatpush1.bf16.msra.mxu0 %v966
  %1495 = vmatprep.subr.bf16.mxu0 %v971
  %1496 = vmatpush1.bf16.msra.mxu0 %v970
  %1497 = vmatprep.subr.bf16.mxu0 %v975
  %1498 = vmatpush1.bf16.msra.mxu0 %v974
  %1499 = vmatprep.subr.bf16.mxu0 %v979
  %1500 = vmatpush1.bf16.msra.mxu0 %v978
  %1501 = vmatprep.subr.bf16.mxu0 %v983
  %1502 = vmatpush1.bf16.msra.mxu0 %v982
  %1503 = vmatprep.subr.bf16.mxu0 %v987
  %1504 = vmatpush1.bf16.msra.mxu0 %v986
  %1505 = vmatprep.subr.bf16.mxu0 %v991
  %1506 = vmatpush1.bf16.msra.mxu0 %v990
  %1507 = vmatprep.subr.bf16.mxu0 %v995
  %1508 = vmatpush1.bf16.msra.mxu0 %v994
  %1509 = vmatprep.subr.bf16.mxu0 %v999
  %1510 = vmatpush1.bf16.msra.mxu0 %v998
  %1511 = vmatprep.subr.bf16.mxu0 %v1003
  %1512 = vmatpush1.bf16.msra.mxu0 %v1002
  %1513 = vmatprep.subr.bf16.mxu0 %v1007
  %1514 = vmatpush1.bf16.msra.mxu0 %v1006
  %1515 = vmatprep.subr.bf16.mxu0 %v1011
  %1516 = vmatpush1.bf16.msra.mxu0 %v1010
  %1517 = vmatprep.mubr.bf16.mxu0 %v74
  %1518 = vmatmul.mubr.bf16.gmra.mrb[0].mxu0 %v73
  %v1519 = vpop.f32.mrb[0].mxu0
  %v1520 = vadd.f32 %v1479, %v1519
  %v1521 = vpop.f32.mrb[0].mxu0
  %v1522 = vadd.f32 %v1481, %v1521
  %v1523 = vpop.f32.mrb[0].mxu0
  %v1524 = vpop.f32.mrb[0].mxu0
  %1525 = vdwg.mxu0
  %1526 = vmatprep.subr.bf16.mxu0 %v1015
  %1527 = vmatpush1.bf16.msra.mxu0 %v1014
  %1528 = vmatprep.subr.bf16.mxu0 %v1019
  %1529 = vmatpush1.bf16.msra.mxu0 %v1018
  %1530 = vmatprep.subr.bf16.mxu0 %v1023
  %1531 = vmatpush1.bf16.msra.mxu0 %v1022
  %1532 = vmatprep.subr.bf16.mxu0 %v1027
  %1533 = vmatpush1.bf16.msra.mxu0 %v1026
  %1534 = vmatprep.subr.bf16.mxu0 %v1031
  %1535 = vmatpush1.bf16.msra.mxu0 %v1030
  %1536 = vmatprep.subr.bf16.mxu0 %v1035
  %1537 = vmatpush1.bf16.msra.mxu0 %v1034
  %1538 = vmatprep.subr.bf16.mxu0 %v1039
  %1539 = vmatpush1.bf16.msra.mxu0 %v1038
  %1540 = vmatprep.subr.bf16.mxu0 %v1043
  %1541 = vmatpush1.bf16.msra.mxu0 %v1042
  %1542 = vmatprep.subr.bf16.mxu0 %v1047
  %1543 = vmatpush1.bf16.msra.mxu0 %v1046
  %1544 = vmatprep.subr.bf16.mxu0 %v1051
  %1545 = vmatpush1.bf16.msra.mxu0 %v1050
  %1546 = vmatprep.subr.bf16.mxu0 %v1055
  %1547 = vmatpush1.bf16.msra.mxu0 %v1054
  %1548 = vmatprep.subr.bf16.mxu0 %v1059
  %1549 = vmatpush1.bf16.msra.mxu0 %v1058
  %1550 = vmatprep.subr.bf16.mxu0 %v1063
  %1551 = vmatpush1.bf16.msra.mxu0 %v1062
  %1552 = vmatprep.subr.bf16.mxu0 %v1067
  %1553 = vmatpush1.bf16.msra.mxu0 %v1066
  %1554 = vmatprep.subr.bf16.mxu0 %v1071
  %1555 = vmatpush1.bf16.msra.mxu0 %v1070
  %1556 = vmatprep.subr.bf16.mxu0 %v1075
  %1557 = vmatpush1.bf16.msra.mxu0 %v1074
  %1558 = vmatprep.mubr.bf16.mxu0 %v76
  %1559 = vmatmul.mubr.bf16.gmra.mrb[0].mxu0 %v75
  %v1560 = vpop.f32.mrb[0].mxu0
  %v1561 = vadd.f32 %v1520, %v1560
  %v1562 = vpop.f32.mrb[0].mxu0
  %v1563 = vadd.f32 %v1522, %v1562
  %v1564 = vpop.f32.mrb[0].mxu0
  %v1565 = vpop.f32.mrb[0].mxu0
  %1566 = vdwg.mxu0
  %1567 = vmatprep.subr.bf16.mxu0 %v1079
  %1568 = vmatpush1.bf16.msra.mxu0 %v1078
  %1569 = vmatprep.subr.bf16.mxu0 0
  %1570 = vmatpush1.bf16.msra.mxu0 0
  %1571 = vmatprep.subr.bf16.mxu0 0
  %1572 = vmatpush1.bf16.msra.mxu0 0
  %1573 = vmatprep.subr.bf16.mxu0 0
  %1574 = vmatpush1.bf16.msra.mxu0 0
  %1575 = vmatprep.subr.bf16.mxu0 0
  %1576 = vmatpush1.bf16.msra.mxu0 0
  %1577 = vmatprep.subr.bf16.mxu0 0
  %1578 = vmatpush1.bf16.msra.mxu0 0
  %1579 = vmatprep.subr.bf16.mxu0 0
  %1580 = vmatpush1.bf16.msra.mxu0 0
  %1581 = vmatprep.subr.bf16.mxu0 0
  %1582 = vmatpush1.bf16.msra.mxu0 0
  %1583 = vmatprep.subr.bf16.mxu0 0
  %1584 = vmatpush1.bf16.msra.mxu0 0
  %1585 = vmatprep.subr.bf16.mxu0 0
  %1586 = vmatpush1.bf16.msra.mxu0 0
  %1587 = vmatprep.subr.bf16.mxu0 0
  %1588 = vmatpush1.bf16.msra.mxu0 0
  %1589 = vmatprep.subr.bf16.mxu0 0
  %1590 = vmatpush1.bf16.msra.mxu0 0
  %1591 = vmatprep.subr.bf16.mxu0 0
  %1592 = vmatpush1.bf16.msra.mxu0 0
  %1593 = vmatprep.subr.bf16.mxu0 0
  %1594 = vmatpush1.bf16.msra.mxu0 0
  %1595 = vmatprep.subr.bf16.mxu0 0
  %1596 = vmatpush1.bf16.msra.mxu0 0
  %1597 = vmatprep.subr.bf16.mxu0 0
  %1598 = vmatpush1.bf16.msra.mxu0 0
  %1599 = vmatprep.mubr.bf16.mxu0 0
  %1600 = vmatmul.mubr.bf16.gmra.mrb[0].mxu0 %v1278
  %v1601 = vpop.f32.mrb[0].mxu0
  %v1602 = vadd.f32 %v1561, %v1601
  %v1603 = vpop.f32.mrb[0].mxu0
  %v1604 = vadd.f32 %v1563, %v1603
  %v1605 = vpop.f32.mrb[0].mxu0
  %v1606 = vpop.f32.mrb[0].mxu0
  %1607 = vdwg.mxu0
  %v1608 = vmul.f32 %v1438, 0.2
  %v1609 = vmul.f32 %v1440, 0.2
  %v1610 = vmul.f32 %v1602, 0.2
  %v1611 = vmul.f32 %v1604, 0.2
  %v1612 = vmax.f32 %v1438, %v1608
  %v1613 = vmax.f32 %v1440, %v1609
  %v1614 = vmax.f32 %v1602, %v1610
  %v1615 = vmax.f32 %v1604, %v1611
  %v1616 = vpack.c.bf16 %v1612, %v1612
  %v1617 = vpack.c.bf16 %v1613, %v1613
  %v1618 = vpack.c.bf16 %v1614, %v1614
  %v1619 = vpack.c.bf16 %v1615, %v1615
  %v1620 = vld [vmem:[%s3] sm:$0xff]
  %v1621 = vld [vmem:[%s3 + $0x8] sm:$0xff]
  %v1622 = vld [vmem:[%s3 + $0x10] sm:$0xff]
  %v1623 = vld [vmem:[%s3 + $0x18] sm:$0xff]
  %v1624 = vld [vmem:[%s3 + $0x20] sm:$0xff]
  %v1625 = vld [vmem:[%s3 + $0x28] sm:$0xff]
  %v1626 = vld [vmem:[%s3 + $0x30] sm:$0xff]
  %v1627 = vld [vmem:[%s3 + $0x38] sm:$0xff]
  %v1628 = vld [vmem:[%s3 + $0x40] sm:$0xff]
  %v1629 = vld [vmem:[%s3 + $0x48] sm:$0xff]
  %v1630 = vld [vmem:[%s3 + $0x50] sm:$0xff]
  %v1631 = vld [vmem:[%s3 + $0x58] sm:$0xff]
  %v1632 = vld [vmem:[%s3 + $0x60] sm:$0xff]
  %v1633 = vld [vmem:[%s3 + $0x68] sm:$0xff]
  %v1634 = vld [vmem:[%s3 + $0x70] sm:$0xff]
  %v1635 = vld [vmem:[%s3 + $0x78] sm:$0xff]
  %v1636 = vld [vmem:[%s3 + $0x80] sm:$0xff]
  %v1637 = vld [vmem:[%s3 + $0x88] sm:$0xff]
  %v1638 = vld [vmem:[%s3 + $0x90] sm:$0xff]
  %v1639 = vld [vmem:[%s3 + $0x98] sm:$0xff]
  %v1640 = vld [vmem:[%s3 + $0xa0] sm:$0xff]
  %v1641 = vld [vmem:[%s3 + $0xa8] sm:$0xff]
  %v1642 = vld [vmem:[%s3 + $0xb0] sm:$0xff]
  %v1643 = vld [vmem:[%s3 + $0xb8] sm:$0xff]
  %v1644 = vld [vmem:[%s3 + $0xc0] sm:$0xff]
  %v1645 = vld [vmem:[%s3 + $0xc8] sm:$0xff]
  %v1646 = vld [vmem:[%s3 + $0xd0] sm:$0xff]
  %v1647 = vld [vmem:[%s3 + $0xd8] sm:$0xff]
  %v1648 = vld [vmem:[%s3 + $0xe0] sm:$0xff]
  %v1649 = vld [vmem:[%s3 + $0xe8] sm:$0xff]
  %v1650 = vld [vmem:[%s3 + $0xf0] sm:$0xff]
  %v1651 = vld [vmem:[%s3 + $0xf8] sm:$0xff]
  %v1652 = vld [vmem:[%s3 + $0x100] sm:$0xff]
  %v1653 = vld [vmem:[%s3 + $0x108] sm:$0xff]
  %v1654 = vld [vmem:[%s3 + $0x110] sm:$0xff]
  %v1655 = vld [vmem:[%s3 + $0x118] sm:$0xff]
  %v1656 = vld [vmem:[%s3 + $0x120] sm:$0xff]
  %v1657 = vld [vmem:[%s3 + $0x128] sm:$0xff]
  %v1658 = vld [vmem:[%s3 + $0x130] sm:$0xff]
  %v1659 = vld [vmem:[%s3 + $0x138] sm:$0xff]
  %v1660 = vld [vmem:[%s3 + $0x140] sm:$0xff]
  %v1661 = vld [vmem:[%s3 + $0x148] sm:$0xff]
  %v1662 = vld [vmem:[%s3 + $0x150] sm:$0xff]
  %v1663 = vld [vmem:[%s3 + $0x158] sm:$0xff]
  %v1664 = vld [vmem:[%s3 + $0x160] sm:$0xff]
  %v1665 = vld [vmem:[%s3 + $0x168] sm:$0xff]
  %v1666 = vld [vmem:[%s3 + $0x170] sm:$0xff]
  %v1667 = vld [vmem:[%s3 + $0x178] sm:$0xff]
  %v1668 = vld [vmem:[%s3 + $0x180] sm:$0xff]
  %v1669 = vld [vmem:[%s3 + $0x188] sm:$0xff]
  %v1670 = vld [vmem:[%s3 + $0x190] sm:$0xff]
  %v1671 = vld [vmem:[%s3 + $0x198] sm:$0xff]
  %v1672 = vld [vmem:[%s3 + $0x1a0] sm:$0xff]
  %v1673 = vld [vmem:[%s3 + $0x1a8] sm:$0xff]
  %v1674 = vld [vmem:[%s3 + $0x1b0] sm:$0xff]
  %v1675 = vld [vmem:[%s3 + $0x1b8] sm:$0xff]
  %v1676 = vld [vmem:[%s3 + $0x1c0] sm:$0xff]
  %v1677 = vld [vmem:[%s3 + $0x1c8] sm:$0xff]
  %v1678 = vld [vmem:[%s3 + $0x1d0] sm:$0xff]
  %v1679 = vld [vmem:[%s3 + $0x1d8] sm:$0xff]
  %v1680 = vld [vmem:[%s3 + $0x1e0] sm:$0xff]
  %v1681 = vld [vmem:[%s3 + $0x1e8] sm:$0xff]
  %v1682 = vld [vmem:[%s3 + $0x1f0] sm:$0xff]
  %v1683 = vld [vmem:[%s3 + $0x1f8] sm:$0xff]
  %v1684 = vld [vmem:[%s4] sm:$0x3]
  %v1686 = vlaneseq
  %v1687 = vshrl.u32 %v1686, 7
  %v1688 = vsub.s32 0, %v1687
  %v1689 = vrot.slane %v1684, %v1688
  %v1690 = vlaneseq
  %v1691 = vshrl.u32 %v1690, 7
  %v1692 = vsub.s32 1, %v1691
  %v1693 = vrot.slane %v1684, %v1692
  %v1760 = vunpack.c.l.b16 %v1620
  %v1761 = vunpack.c.h.b16 %v1620
  %v1762 = vunpack.c.l.b16 %v1621
  %v1763 = vunpack.c.h.b16 %v1621
  %v1764 = vunpack.c.l.b16 %v1622
  %v1765 = vunpack.c.h.b16 %v1622
  %v1766 = vunpack.c.l.b16 %v1623
  %v1767 = vunpack.c.h.b16 %v1623
  %v1768 = vunpack.c.l.b16 %v1624
  %v1769 = vunpack.c.h.b16 %v1624
  %v1770 = vunpack.c.l.b16 %v1625
  %v1771 = vunpack.c.h.b16 %v1625
  %v1772 = vunpack.c.l.b16 %v1626
  %v1773 = vunpack.c.h.b16 %v1626
  %v1774 = vunpack.c.l.b16 %v1627
  %v1775 = vunpack.c.h.b16 %v1627
  %v1776 = vunpack.c.l.b16 %v1628
  %v1777 = vunpack.c.h.b16 %v1628
  %v1778 = vunpack.c.l.b16 %v1629
  %v1779 = vunpack.c.h.b16 %v1629
  %v1780 = vunpack.c.l.b16 %v1630
  %v1781 = vunpack.c.h.b16 %v1630
  %v1782 = vunpack.c.l.b16 %v1631
  %v1783 = vunpack.c.h.b16 %v1631
  %v1784 = vunpack.c.l.b16 %v1632
  %v1785 = vunpack.c.h.b16 %v1632
  %v1786 = vunpack.c.l.b16 %v1633
  %v1787 = vunpack.c.h.b16 %v1633
  %v1788 = vunpack.c.l.b16 %v1634
  %v1789 = vunpack.c.h.b16 %v1634
  %v1790 = vunpack.c.l.b16 %v1635
  %v1791 = vunpack.c.h.b16 %v1635
  %v1792 = vunpack.c.l.b16 %v1636
  %v1793 = vunpack.c.h.b16 %v1636
  %v1794 = vunpack.c.l.b16 %v1637
  %v1795 = vunpack.c.h.b16 %v1637
  %v1796 = vunpack.c.l.b16 %v1638
  %v1797 = vunpack.c.h.b16 %v1638
  %v1798 = vunpack.c.l.b16 %v1639
  %v1799 = vunpack.c.h.b16 %v1639
  %v1800 = vunpack.c.l.b16 %v1640
  %v1801 = vunpack.c.h.b16 %v1640
  %v1802 = vunpack.c.l.b16 %v1641
  %v1803 = vunpack.c.h.b16 %v1641
  %v1804 = vunpack.c.l.b16 %v1642
  %v1805 = vunpack.c.h.b16 %v1642
  %v1806 = vunpack.c.l.b16 %v1643
  %v1807 = vunpack.c.h.b16 %v1643
  %v1808 = vunpack.c.l.b16 %v1644
  %v1809 = vunpack.c.h.b16 %v1644
  %v1810 = vunpack.c.l.b16 %v1645
  %v1811 = vunpack.c.h.b16 %v1645
  %v1812 = vunpack.c.l.b16 %v1646
  %v1813 = vunpack.c.h.b16 %v1646
  %v1814 = vunpack.c.l.b16 %v1647
  %v1815 = vunpack.c.h.b16 %v1647
  %v1816 = vunpack.c.l.b16 %v1648
  %v1817 = vunpack.c.h.b16 %v1648
  %v1818 = vunpack.c.l.b16 %v1649
  %v1819 = vunpack.c.h.b16 %v1649
  %v1820 = vunpack.c.l.b16 %v1650
  %v1821 = vunpack.c.h.b16 %v1650
  %v1822 = vunpack.c.l.b16 %v1651
  %v1823 = vunpack.c.h.b16 %v1651
  %v1824 = vunpack.c.l.b16 %v1652
  %v1825 = vunpack.c.h.b16 %v1652
  %v1826 = vunpack.c.l.b16 %v1653
  %v1827 = vunpack.c.h.b16 %v1653
  %v1828 = vunpack.c.l.b16 %v1654
  %v1829 = vunpack.c.h.b16 %v1654
  %v1830 = vunpack.c.l.b16 %v1655
  %v1831 = vunpack.c.h.b16 %v1655
  %v1832 = vunpack.c.l.b16 %v1656
  %v1833 = vunpack.c.h.b16 %v1656
  %v1834 = vunpack.c.l.b16 %v1657
  %v1835 = vunpack.c.h.b16 %v1657
  %v1836 = vunpack.c.l.b16 %v1658
  %v1837 = vunpack.c.h.b16 %v1658
  %v1838 = vunpack.c.l.b16 %v1659
  %v1839 = vunpack.c.h.b16 %v1659
  %v1840 = vunpack.c.l.b16 %v1660
  %v1841 = vunpack.c.h.b16 %v1660
  %v1842 = vunpack.c.l.b16 %v1661
  %v1843 = vunpack.c.h.b16 %v1661
  %v1844 = vunpack.c.l.b16 %v1662
  %v1845 = vunpack.c.h.b16 %v1662
  %v1846 = vunpack.c.l.b16 %v1663
  %v1847 = vunpack.c.h.b16 %v1663
  %v1848 = vunpack.c.l.b16 %v1664
  %v1849 = vunpack.c.h.b16 %v1664
  %v1850 = vunpack.c.l.b16 %v1665
  %v1851 = vunpack.c.h.b16 %v1665
  %v1852 = vunpack.c.l.b16 %v1666
  %v1853 = vunpack.c.h.b16 %v1666
  %v1854 = vunpack.c.l.b16 %v1667
  %v1855 = vunpack.c.h.b16 %v1667
  %v1856 = vunpack.c.l.b16 %v1668
  %v1857 = vunpack.c.h.b16 %v1668
  %v1858 = vunpack.c.l.b16 %v1669
  %v1859 = vunpack.c.h.b16 %v1669
  %v1860 = vunpack.c.l.b16 %v1670
  %v1861 = vunpack.c.h.b16 %v1670
  %v1862 = vunpack.c.l.b16 %v1671
  %v1863 = vunpack.c.h.b16 %v1671
  %v1864 = vunpack.c.l.b16 %v1672
  %v1865 = vunpack.c.h.b16 %v1672
  %v1866 = vunpack.c.l.b16 %v1673
  %v1867 = vunpack.c.h.b16 %v1673
  %v1868 = vunpack.c.l.b16 %v1674
  %v1869 = vunpack.c.h.b16 %v1674
  %v1870 = vunpack.c.l.b16 %v1675
  %v1871 = vunpack.c.h.b16 %v1675
  %v1872 = vunpack.c.l.b16 %v1676
  %v1873 = vunpack.c.h.b16 %v1676
  %v1874 = vunpack.c.l.b16 %v1677
  %v1875 = vunpack.c.h.b16 %v1677
  %v1876 = vunpack.c.l.b16 %v1678
  %v1877 = vunpack.c.h.b16 %v1678
  %v1878 = vunpack.c.l.b16 %v1679
  %v1879 = vunpack.c.h.b16 %v1679
  %v1880 = vunpack.c.l.b16 %v1680
  %v1881 = vunpack.c.h.b16 %v1680
  %v1882 = vunpack.c.l.b16 %v1681
  %v1883 = vunpack.c.h.b16 %v1681
  %v1884 = vunpack.c.l.b16 %v1682
  %v1885 = vunpack.c.h.b16 %v1682
  %v1886 = vunpack.c.l.b16 %v1683
  %v1887 = vunpack.c.h.b16 %v1683
  %v1888 = vpack.c.b16 %v1762, %v1760
  %v1889 = vpack.c.b16 %v1763, %v1761
  %v1890 = vpack.c.b16 %v1766, %v1764
  %v1891 = vpack.c.b16 %v1767, %v1765
  %v1892 = vpack.c.b16 %v1770, %v1768
  %v1893 = vpack.c.b16 %v1771, %v1769
  %v1894 = vpack.c.b16 %v1774, %v1772
  %v1895 = vpack.c.b16 %v1775, %v1773
  %v1896 = vpack.c.b16 %v1778, %v1776
  %v1897 = vpack.c.b16 %v1779, %v1777
  %v1898 = vpack.c.b16 %v1782, %v1780
  %v1899 = vpack.c.b16 %v1783, %v1781
  %v1900 = vpack.c.b16 %v1786, %v1784
  %v1901 = vpack.c.b16 %v1787, %v1785
  %v1902 = vpack.c.b16 %v1790, %v1788
  %v1903 = vpack.c.b16 %v1791, %v1789
  %v1904 = vpack.c.b16 %v1794, %v1792
  %v1905 = vpack.c.b16 %v1795, %v1793
  %v1906 = vpack.c.b16 %v1798, %v1796
  %v1907 = vpack.c.b16 %v1799, %v1797
  %v1908 = vpack.c.b16 %v1802, %v1800
  %v1909 = vpack.c.b16 %v1803, %v1801
  %v1910 = vpack.c.b16 %v1806, %v1804
  %v1911 = vpack.c.b16 %v1807, %v1805
  %v1912 = vpack.c.b16 %v1810, %v1808
  %v1913 = vpack.c.b16 %v1811, %v1809
  %v1914 = vpack.c.b16 %v1814, %v1812
  %v1915 = vpack.c.b16 %v1815, %v1813
  %v1916 = vpack.c.b16 %v1818, %v1816
  %v1917 = vpack.c.b16 %v1819, %v1817
  %v1918 = vpack.c.b16 %v1822, %v1820
  %v1919 = vpack.c.b16 %v1823, %v1821
  %v1920 = vpack.c.b16 %v1826, %v1824
  %v1921 = vpack.c.b16 %v1827, %v1825
  %v1922 = vpack.c.b16 %v1830, %v1828
  %v1923 = vpack.c.b16 %v1831, %v1829
  %v1924 = vpack.c.b16 %v1834, %v1832
  %v1925 = vpack.c.b16 %v1835, %v1833
  %v1926 = vpack.c.b16 %v1838, %v1836
  %v1927 = vpack.c.b16 %v1839, %v1837
  %v1928 = vpack.c.b16 %v1842, %v1840
  %v1929 = vpack.c.b16 %v1843, %v1841
  %v1930 = vpack.c.b16 %v1846, %v1844
  %v1931 = vpack.c.b16 %v1847, %v1845
  %v1932 = vpack.c.b16 %v1850, %v1848
  %v1933 = vpack.c.b16 %v1851, %v1849
  %v1934 = vpack.c.b16 %v1854, %v1852
  %v1935 = vpack.c.b16 %v1855, %v1853
  %v1936 = vpack.c.b16 %v1858, %v1856
  %v1937 = vpack.c.b16 %v1859, %v1857
  %v1938 = vpack.c.b16 %v1862, %v1860
  %v1939 = vpack.c.b16 %v1863, %v1861
  %v1940 = vpack.c.b16 %v1866, %v1864
  %v1941 = vpack.c.b16 %v1867, %v1865
  %v1942 = vpack.c.b16 %v1870, %v1868
  %v1943 = vpack.c.b16 %v1871, %v1869
  %v1944 = vpack.c.b16 %v1874, %v1872
  %v1945 = vpack.c.b16 %v1875, %v1873
  %v1946 = vpack.c.b16 %v1878, %v1876
  %v1947 = vpack.c.b16 %v1879, %v1877
  %v1948 = vpack.c.b16 %v1882, %v1880
  %v1949 = vpack.c.b16 %v1883, %v1881
  %v1950 = vpack.c.b16 %v1886, %v1884
  %v1951 = vpack.c.b16 %v1887, %v1885
  %2016 = vmatprep.subr.bf16.mxu0 %v1889
  %2017 = vmatpush1.bf16.msra.mxu0 %v1888
  %2018 = vmatprep.subr.bf16.mxu0 %v1891
  %2019 = vmatpush1.bf16.msra.mxu0 %v1890
  %2020 = vmatprep.subr.bf16.mxu0 %v1893
  %2021 = vmatpush1.bf16.msra.mxu0 %v1892
  %2022 = vmatprep.subr.bf16.mxu0 %v1895
  %2023 = vmatpush1.bf16.msra.mxu0 %v1894
  %2024 = vmatprep.subr.bf16.mxu0 %v1897
  %2025 = vmatpush1.bf16.msra.mxu0 %v1896
  %2026 = vmatprep.subr.bf16.mxu0 %v1899
  %2027 = vmatpush1.bf16.msra.mxu0 %v1898
  %2028 = vmatprep.subr.bf16.mxu0 %v1901
  %2029 = vmatpush1.bf16.msra.mxu0 %v1900
  %2030 = vmatprep.subr.bf16.mxu0 %v1903
  %2031 = vmatpush1.bf16.msra.mxu0 %v1902
  %2032 = vmatprep.subr.bf16.mxu0 %v1905
  %2033 = vmatpush1.bf16.msra.mxu0 %v1904
  %2034 = vmatprep.subr.bf16.mxu0 %v1907
  %2035 = vmatpush1.bf16.msra.mxu0 %v1906
  %2036 = vmatprep.subr.bf16.mxu0 %v1909
  %2037 = vmatpush1.bf16.msra.mxu0 %v1908
  %2038 = vmatprep.subr.bf16.mxu0 %v1911
  %2039 = vmatpush1.bf16.msra.mxu0 %v1910
  %2040 = vmatprep.subr.bf16.mxu0 %v1913
  %2041 = vmatpush1.bf16.msra.mxu0 %v1912
  %2042 = vmatprep.subr.bf16.mxu0 %v1915
  %2043 = vmatpush1.bf16.msra.mxu0 %v1914
  %2044 = vmatprep.subr.bf16.mxu0 %v1917
  %2045 = vmatpush1.bf16.msra.mxu0 %v1916
  %2046 = vmatprep.subr.bf16.mxu0 %v1919
  %2047 = vmatpush1.bf16.msra.mxu0 %v1918
  %2048 = vmatprep.mubr.bf16.mxu0 %v1617
  %2049 = vmatmul.mubr.bf16.gmra.mrb[0].mxu0 %v1616
  %v2050 = vpop.f32.mrb[0].mxu0
  %v2051 = vadd.f32 %v1689, %v2050
  %v2052 = vpop.f32.mrb[0].mxu0
  %v2053 = vadd.f32 %v1693, %v2052
  %v2054 = vpop.f32.mrb[0].mxu0
  %v2055 = vpop.f32.mrb[0].mxu0
  %2056 = vdwg.mxu0
  %2057 = vmatprep.subr.bf16.mxu0 %v1921
  %2058 = vmatpush1.bf16.msra.mxu0 %v1920
  %2059 = vmatprep.subr.bf16.mxu0 %v1923
  %2060 = vmatpush1.bf16.msra.mxu0 %v1922
  %2061 = vmatprep.subr.bf16.mxu0 %v1925
  %2062 = vmatpush1.bf16.msra.mxu0 %v1924
  %2063 = vmatprep.subr.bf16.mxu0 %v1927
  %2064 = vmatpush1.bf16.msra.mxu0 %v1926
  %2065 = vmatprep.subr.bf16.mxu0 %v1929
  %2066 = vmatpush1.bf16.msra.mxu0 %v1928
  %2067 = vmatprep.subr.bf16.mxu0 %v1931
  %2068 = vmatpush1.bf16.msra.mxu0 %v1930
  %2069 = vmatprep.subr.bf16.mxu0 %v1933
  %2070 = vmatpush1.bf16.msra.mxu0 %v1932
  %2071 = vmatprep.subr.bf16.mxu0 %v1935
  %2072 = vmatpush1.bf16.msra.mxu0 %v1934
  %2073 = vmatprep.subr.bf16.mxu0 %v1937
  %2074 = vmatpush1.bf16.msra.mxu0 %v1936
  %2075 = vmatprep.subr.bf16.mxu0 %v1939
  %2076 = vmatpush1.bf16.msra.mxu0 %v1938
  %2077 = vmatprep.subr.bf16.mxu0 %v1941
  %2078 = vmatpush1.bf16.msra.mxu0 %v1940
  %2079 = vmatprep.subr.bf16.mxu0 %v1943
  %2080 = vmatpush1.bf16.msra.mxu0 %v1942
  %2081 = vmatprep.subr.bf16.mxu0 %v1945
  %2082 = vmatpush1.bf16.msra.mxu0 %v1944
  %2083 = vmatprep.subr.bf16.mxu0 %v1947
  %2084 = vmatpush1.bf16.msra.mxu0 %v1946
  %2085 = vmatprep.subr.bf16.mxu0 %v1949
  %2086 = vmatpush1.bf16.msra.mxu0 %v1948
  %2087 = vmatprep.subr.bf16.mxu0 %v1951
  %2088 = vmatpush1.bf16.msra.mxu0 %v1950
  %2089 = vmatprep.mubr.bf16.mxu0 %v1619
  %2090 = vmatmul.mubr.bf16.gmra.mrb[0].mxu0 %v1618
  %v2091 = vpop.f32.mrb[0].mxu0
  %v2092 = vadd.f32 %v2051, %v2091
  %v2093 = vpop.f32.mrb[0].mxu0
  %v2094 = vadd.f32 %v2053, %v2093
  %v2095 = vpop.f32.mrb[0].mxu0
  %v2096 = vpop.f32.mrb[0].mxu0
  %2097 = vdwg.mxu0
  %v2098 = vmul.f32 %v2092, 0.2
  %v2099 = vmul.f32 %v2094, 0.2
  %v2100 = vmax.f32 %v2092, %v2098
  %v2101 = vmax.f32 %v2094, %v2099
  %v2102 = vpack.c.bf16 %v2100, %v2100
  %v2103 = vpack.c.bf16 %v2101, %v2101
  %v2104 = vld [vmem:[%s5] sm:$0xf]
  %v2105 = vld [vmem:[%s5 + $0x4] sm:$0xf]
  %v2106 = vld [vmem:[%s5 + $0x8] sm:$0xf]
  %v2107 = vld [vmem:[%s5 + $0xc] sm:$0xf]
  %v2108 = vld [vmem:[%s5 + $0x10] sm:$0xf]
  %v2109 = vld [vmem:[%s5 + $0x14] sm:$0xf]
  %v2110 = vld [vmem:[%s5 + $0x18] sm:$0xf]
  %v2111 = vld [vmem:[%s5 + $0x1c] sm:$0xf]
  %v2112 = vld [vmem:[%s5 + $0x20] sm:$0xf]
  %v2113 = vld [vmem:[%s5 + $0x24] sm:$0xf]
  %v2114 = vld [vmem:[%s5 + $0x28] sm:$0xf]
  %v2115 = vld [vmem:[%s5 + $0x2c] sm:$0xf]
  %v2116 = vld [vmem:[%s5 + $0x30] sm:$0xf]
  %v2117 = vld [vmem:[%s5 + $0x34] sm:$0xf]
  %v2118 = vld [vmem:[%s5 + $0x38] sm:$0xf]
  %v2119 = vld [vmem:[%s5 + $0x3c] sm:$0xf]
  %v2120 = vld [vmem:[%s5 + $0x40] sm:$0xf]
  %v2121 = vld [vmem:[%s5 + $0x44] sm:$0xf]
  %v2122 = vld [vmem:[%s5 + $0x48] sm:$0xf]
  %v2123 = vld [vmem:[%s5 + $0x4c] sm:$0xf]
  %v2124 = vld [vmem:[%s5 + $0x50] sm:$0xf]
  %v2125 = vld [vmem:[%s5 + $0x54] sm:$0xf]
  %v2126 = vld [vmem:[%s5 + $0x58] sm:$0xf]
  %v2127 = vld [vmem:[%s5 + $0x5c] sm:$0xf]
  %v2128 = vld [vmem:[%s5 + $0x60] sm:$0xf]
  %v2129 = vld [vmem:[%s5 + $0x64] sm:$0xf]
  %v2130 = vld [vmem:[%s5 + $0x68] sm:$0xf]
  %v2131 = vld [vmem:[%s5 + $0x6c] sm:$0xf]
  %v2132 = vld [vmem:[%s5 + $0x70] sm:$0xf]
  %v2133 = vld [vmem:[%s5 + $0x74] sm:$0xf]
  %v2134 = vld [vmem:[%s5 + $0x78] sm:$0xf]
  %v2135 = vld [vmem:[%s5 + $0x7c] sm:$0xf]
  %v2136 = vld [vmem:[%s6] sm:$0x1]
  %v2138 = vlaneseq
  %v2139 = vshrl.u32 %v2138, 7
  %v2140 = vsub.s32 0, %v2139
  %v2141 = vrot.slane %v2136, %v2140
  %v2175 = vunpack.c.l.b16 %v2104
  %v2176 = vunpack.c.l.b16 %v2105
  %v2177 = vunpack.c.l.b16 %v2106
  %v2178 = vunpack.c.l.b16 %v2107
  %v2179 = vunpack.c.l.b16 %v2108
  %v2180 = vunpack.c.l.b16 %v2109
  %v2181 = vunpack.c.l.b16 %v2110
  %v2182 = vunpack.c.l.b16 %v2111
  %v2183 = vunpack.c.l.b16 %v2112
  %v2184 = vunpack.c.l.b16 %v2113
  %v2185 = vunpack.c.l.b16 %v2114
  %v2186 = vunpack.c.l.b16 %v2115
  %v2187 = vunpack.c.l.b16 %v2116
  %v2188 = vunpack.c.l.b16 %v2117
  %v2189 = vunpack.c.l.b16 %v2118
  %v2190 = vunpack.c.l.b16 %v2119
  %v2191 = vunpack.c.l.b16 %v2120
  %v2192 = vunpack.c.l.b16 %v2121
  %v2193 = vunpack.c.l.b16 %v2122
  %v2194 = vunpack.c.l.b16 %v2123
  %v2195 = vunpack.c.l.b16 %v2124
  %v2196 = vunpack.c.l.b16 %v2125
  %v2197 = vunpack.c.l.b16 %v2126
  %v2198 = vunpack.c.l.b16 %v2127
  %v2199 = vunpack.c.l.b16 %v2128
  %v2200 = vunpack.c.l.b16 %v2129
  %v2201 = vunpack.c.l.b16 %v2130
  %v2202 = vunpack.c.l.b16 %v2131
  %v2203 = vunpack.c.l.b16 %v2132
  %v2204 = vunpack.c.l.b16 %v2133
  %v2205 = vunpack.c.l.b16 %v2134
  %v2206 = vunpack.c.l.b16 %v2135
  %v2207 = vpack.c.b16 %v2176, %v2175
  %v2208 = vpack.c.b16 %v2178, %v2177
  %v2209 = vpack.c.b16 %v2180, %v2179
  %v2210 = vpack.c.b16 %v2182, %v2181
  %v2211 = vpack.c.b16 %v2184, %v2183
  %v2212 = vpack.c.b16 %v2186, %v2185
  %v2213 = vpack.c.b16 %v2188, %v2187
  %v2214 = vpack.c.b16 %v2190, %v2189
  %v2215 = vpack.c.b16 %v2192, %v2191
  %v2216 = vpack.c.b16 %v2194, %v2193
  %v2217 = vpack.c.b16 %v2196, %v2195
  %v2218 = vpack.c.b16 %v2198, %v2197
  %v2219 = vpack.c.b16 %v2200, %v2199
  %v2220 = vpack.c.b16 %v2202, %v2201
  %v2221 = vpack.c.b16 %v2204, %v2203
  %v2222 = vpack.c.b16 %v2206, %v2205
  %2239 = vmatprep.subr.bf16.mxu0 0
  %2240 = vmatpush1.bf16.msra.mxu0 %v2207
  %2241 = vmatprep.subr.bf16.mxu0 0
  %2242 = vmatpush1.bf16.msra.mxu0 %v2208
  %2243 = vmatprep.subr.bf16.mxu0 0
  %2244 = vmatpush1.bf16.msra.mxu0 %v2209
  %2245 = vmatprep.subr.bf16.mxu0 0
  %2246 = vmatpush1.bf16.msra.mxu0 %v2210
  %2247 = vmatprep.subr.bf16.mxu0 0
  %2248 = vmatpush1.bf16.msra.mxu0 %v2211
  %2249 = vmatprep.subr.bf16.mxu0 0
  %2250 = vmatpush1.bf16.msra.mxu0 %v2212
  %2251 = vmatprep.subr.bf16.mxu0 0
  %2252 = vmatpush1.bf16.msra.mxu0 %v2213
  %2253 = vmatprep.subr.bf16.mxu0 0
  %2254 = vmatpush1.bf16.msra.mxu0 %v2214
  %2255 = vmatprep.subr.bf16.mxu0 0
  %2256 = vmatpush1.bf16.msra.mxu0 %v2215
  %2257 = vmatprep.subr.bf16.mxu0 0
  %2258 = vmatpush1.bf16.msra.mxu0 %v2216
  %2259 = vmatprep.subr.bf16.mxu0 0
  %2260 = vmatpush1.bf16.msra.mxu0 %v2217
  %2261 = vmatprep.subr.bf16.mxu0 0
  %2262 = vmatpush1.bf16.msra.mxu0 %v2218
  %2263 = vmatprep.subr.bf16.mxu0 0
  %2264 = vmatpush1.bf16.msra.mxu0 %v2219
  %2265 = vmatprep.subr.bf16.mxu0 0
  %2266 = vmatpush1.bf16.msra.mxu0 %v2220
  %2267 = vmatprep.subr.bf16.mxu0 0
  %2268 = vmatpush1.bf16.msra.mxu0 %v2221
  %2269 = vmatprep.subr.bf16.mxu0 0
  %2270 = vmatpush1.bf16.msra.mxu0 %v2222
  %2271 = vmatprep.mubr.bf16.mxu0 %v2103
  %2272 = vmatmul.mubr.bf16.gmra.mrb[0].mxu0 %v2102
  %v2273 = vpop.f32.mrb[0].mxu0
  %v2274 = vadd.f32 %v2141, %v2273
  %v2275 = vpop.f32.mrb[0].mxu0
  %v2276 = vpop.f32.mrb[0].mxu0
  %v2277 = vpop.f32.mrb[0].mxu0
  %2278 = vdwg.mxu0
  %v2279 = vxor.u32 %v2274, 2147483648
  %v2280 = vmul.f32 %v2279, 1.442695
  %v2281 = vpow.pop %v2280
  %v2282 = vadd.f32 %v2281, 1.0
  %v2283 = vrcp.pop %v2282
  %v2284 = vmul.f32 1.0, %v2283
  %vm2285 = vcmask 1024
  %2286 = vst.msk [vmem:[%s7] sm:$0x3] %vm2285, %v2284
  // Predicated region
  $region30: #{discriminator_forward.1} parent=0 // pred_check
    _
  $region31: #{discriminator_forward.1} parent=0 // pred_check_branch
    %2288 = sbr.rel (0) target = $region33
  $region32: #{discriminator_forward.1} parent=0 // pred_region
    _
  $region33: #{discriminator_forward.1} parent=0 // pred_fallthru
    _
  // Predicated region
  $region34: #{discriminator_forward.1} parent=0 // pred_check
    _
  $region35: #{discriminator_forward.1} parent=0 // pred_check_branch
    %2290 = sbr.rel (0) target = $region37
  $region36: #{discriminator_forward.1} parent=0 // pred_region
    _
  $region37: #{discriminator_forward.1} parent=0 // pred_fallthru
    _

</llo_original>
